<compile_context>
chip_gen: v7x
topology: tpu7x:2x2x1
jax: 0.10.0
libtpu: 0.0.40
codegen_flags: <defaults>
</compile_context>

<pallas_src>
import functools

import jax
import jax.numpy as jnp
from jax.experimental import pallas as pl
from jax.experimental.pallas import tpu as pltpu

NEG_SLOPE = 0.01      # torch.nn.functional.leaky_relu default negative_slope
LANE = 128
MAX_TM = 2048
VMEM_LIMIT_BYTES = 48 * 1024 * 1024


def _round_up(v, m):
    return (v + m - 1) // m * m


def _use_bf16_act():
    """bf16 VALU exists on v6e/v7x; keep f32 activations on v5e and older."""
    try:
        kind = jax.devices()[0].device_kind.lower()
    except Exception:
        return True
    return not any(t in kind for t in ("v2", "v3", "v4", "v5"))


def mlp_kernel(x_ref, w1_ref, w2_ref, w3_ref, w4_ref, w5_ref, w6_ref,
               b_ref, o_ref, *, out_pads, act_bf16):
    """Fused forward pass for one (TM, 128) batch tile.

    x_ref:  (TM, 128) bf16 input tile (zero-padded features).
    w*_ref: bf16 weight blocks, VMEM-resident (constant index maps).
    b_ref:  (8, 1024) f32; row l holds layer-l bias, zero padded.
    o_ref:  (TM, 128) bf16 output tile (n_output real columns + zero pad).
    """
    w_refs = (w1_ref, w2_ref, w3_ref, w4_ref, w5_ref, w6_ref)
    h = x_ref[...]                                        # bf16 (TM, 128)
    for l, w_ref in enumerate(w_refs):
        out_pad = out_pads[l]
        acc = jnp.dot(h, w_ref[...], preferred_element_type=jnp.float32)
        acc = acc + b_ref[l:l + 1, :out_pad]              # f32 bias add
        if l < len(w_refs) - 1:
            if act_bf16:
                hb = acc.astype(jnp.bfloat16)             # bf16 leaky_relu
                h = jnp.where(hb > 0, hb, NEG_SLOPE * hb)
            else:
                acc = jnp.where(acc > 0, acc, NEG_SLOPE * acc)
                h = acc.astype(jnp.bfloat16)
        else:
            o_ref[...] = acc.astype(o_ref.dtype)


def init_params(key, n_input_feature, n_output, dtype=jnp.float32):
    """PyTorch-style uniform(-1/sqrt(fan_in), 1/sqrt(fan_in)) init.

    Returns list of (W, b) with W stored as (in_features, out_features)."""
    dims = [n_input_feature, 1024, 512, 256, 128, 64, n_output]
    params = []
    for i in range(len(dims) - 1):
        fan_in, fan_out = dims[i], dims[i + 1]
        key, kw, kb = jax.random.split(key, 3)
        bound = 1.0 / jnp.sqrt(fan_in)
        w = jax.random.uniform(kw, (fan_in, fan_out), dtype, -bound, bound)
        b = jax.random.uniform(kb, (1, fan_out), dtype, -bound, bound)
        params.append((w, b))
    return params


@functools.partial(jax.jit, static_argnames=("act_bf16",))
def _forward_impl(x, params, act_bf16):
    n, d = x.shape
    n_output = params[-1][0].shape[1]

    # Lane-dense padded feature dims at every layer boundary.
    dims = [d] + [w.shape[1] for w, _ in params]
    pdims = [_round_up(v, LANE) for v in dims]

    # Zero-pad + cast weights to bf16; pack the 6 biases into one (8, 1024)
    # f32 block (row l = layer-l bias).
    w_list = []
    b_all = jnp.zeros((8, max(pdims[1:])), jnp.float32)
    for i, (w, b) in enumerate(params):
        w_p = jnp.zeros((pdims[i], pdims[i + 1]), jnp.bfloat16)
        w_p = w_p.at[:w.shape[0], :w.shape[1]].set(w.astype(jnp.bfloat16))
        w_list.append(w_p)
        b_all = b_all.at[i, :b.shape[1]].set(b[0].astype(jnp.float32))

    # Batch tile: large enough to amortize per-step overhead and MXU weight
    # pushes; >= 2 grid steps for mid/large n so both v7x TensorCores engage;
    # multiple of 16 so bf16 (16,128) tiling is satisfied for small n.
    if n <= 256:
        tm = _round_up(max(n, 16), 16)
    else:
        tm = min(MAX_TM, _round_up((n + 1) // 2, 256))
    n_pad = _round_up(n, tm)

    x_p = jnp.zeros((n_pad, pdims[0]), jnp.bfloat16).at[:n, :d].set(
        x.astype(jnp.bfloat16))

    grid = (n_pad // tm,)

    in_specs = [pl.BlockSpec((tm, pdims[0]), lambda i: (i, 0))]
    for a in w_list + [b_all]:
        # Full-shape block, constant index -> VMEM-resident, DMA'd once.
        in_specs.append(pl.BlockSpec(a.shape, lambda i: (0, 0)))
    out_spec = pl.BlockSpec((tm, pdims[-1]), lambda i: (i, 0))

    flops = 2 * n_pad * sum(pdims[i] * pdims[i + 1]
                            for i in range(len(pdims) - 1))
    bytes_accessed = (x_p.size * 2 + n_pad * pdims[-1] * 2 +
                      sum(int(w.size) * 2 for w in w_list) +
                      int(b_all.size) * 4)
    cost = pl.CostEstimate(flops=int(flops), transcendentals=0,
                           bytes_accessed=int(bytes_accessed))

    kernel = functools.partial(mlp_kernel, out_pads=tuple(pdims[1:]),
                               act_bf16=act_bf16)

    out_padded = pl.pallas_call(
        kernel,
        out_shape=jax.ShapeDtypeStruct((n_pad, pdims[-1]), jnp.bfloat16),
        grid=grid,
        in_specs=in_specs,
        out_specs=out_spec,
        compiler_params=pltpu.CompilerParams(
            dimension_semantics=("parallel",),
            vmem_limit_bytes=VMEM_LIMIT_BYTES),
        cost_estimate=cost,
    )(x_p, *w_list, b_all)

    return out_padded[:n, :n_output].astype(jnp.float32)


def neural_network_forward(x, params):
    return _forward_impl(x, params, act_bf16=_use_bf16_act())


def reference_forward(x, params):
    """Pure-JAX f32 reference for correctness checking."""
    h = x.astype(jnp.float32)
    for i, (w, b) in enumerate(params):
        h = h @ w + b
        if i < len(params) - 1:
            h = jnp.where(h > 0, h, NEG_SLOPE * h)
    return h


if __name__ == "__main__":
    key = jax.random.PRNGKey(0)
    k_x, k_p = jax.random.split(key)

    batch = 8
    n_input_feature = 32
    n_output = 10

    x = jax.random.normal(k_x, (batch, n_input_feature), jnp.float32)
    params = init_params(k_p, n_input_feature, n_output)

    out = neural_network_forward(x, params)
    out = jax.block_until_ready(out)

    ref = reference_forward(x, params)
    assert out.shape == (batch, n_output), out.shape
    # bf16 inputs/weights/activations (f32 accumulation) -> loose tolerance.
    assert jnp.allclose(out, ref, atol=1e-1, rtol=1e-1), "mismatch vs reference"

    print("KERNEL_OK")
</pallas_src>

<mosaic_0001>
module attributes {stable_mosaic.version = 11 : i64} {
  func.func @mlp_kernel(%arg0: i32, %arg1: memref<16x128xbf16, #tpu.memory_space<vmem>>, %arg2: memref<128x1024xbf16, #tpu.memory_space<vmem>>, %arg3: memref<1024x512xbf16, #tpu.memory_space<vmem>>, %arg4: memref<512x256xbf16, #tpu.memory_space<vmem>>, %arg5: memref<256x128xbf16, #tpu.memory_space<vmem>>, %arg6: memref<128x128xbf16, #tpu.memory_space<vmem>>, %arg7: memref<128x128xbf16, #tpu.memory_space<vmem>>, %arg8: memref<8x1024xf32, #tpu.memory_space<vmem>>, %arg9: memref<16x128xbf16, #tpu.memory_space<vmem>>) attributes {dimension_semantics = [#tpu.dimension_semantics<parallel>], iteration_bounds = array<i64: 1>, scalar_prefetch = 0 : i64, scratch_operands = 0 : i64, tpu.core_type = #tpu.core_type<tc>, window_params = [{transform_indices = @transform_0, window_bounds = array<i64: 16, 128>}, {pipeline_mode = #tpu.pipeline_mode<synchronous>, transform_indices = @transform_1, window_bounds = array<i64: 128, 1024>}, {pipeline_mode = #tpu.pipeline_mode<synchronous>, transform_indices = @transform_2, window_bounds = array<i64: 1024, 512>}, {pipeline_mode = #tpu.pipeline_mode<synchronous>, transform_indices = @transform_3, window_bounds = array<i64: 512, 256>}, {pipeline_mode = #tpu.pipeline_mode<synchronous>, transform_indices = @transform_4, window_bounds = array<i64: 256, 128>}, {pipeline_mode = #tpu.pipeline_mode<synchronous>, transform_indices = @transform_5, window_bounds = array<i64: 128, 128>}, {pipeline_mode = #tpu.pipeline_mode<synchronous>, transform_indices = @transform_6, window_bounds = array<i64: 128, 128>}, {pipeline_mode = #tpu.pipeline_mode<synchronous>, transform_indices = @transform_7, window_bounds = array<i64: 8, 1024>}, {transform_indices = @transform_8, window_bounds = array<i64: 16, 128>}]} {
    %c0 = arith.constant 0 : index
    %c0_0 = arith.constant 0 : index
    %0 = vector.load %arg1[%c0, %c0_0] : memref<16x128xbf16, #tpu.memory_space<vmem>>, vector<16x128xbf16>
    %c0_1 = arith.constant 0 : index
    %c0_2 = arith.constant 0 : index
    %1 = vector.load %arg2[%c0_1, %c0_2] : memref<128x1024xbf16, #tpu.memory_space<vmem>>, vector<128x1024xbf16>
    %cst = arith.constant dense<0.000000e+00> : vector<16x1024xf32>
    %2 = tpu.matmul %0, %1, %cst {dimension_numbers = #tpu.dot_dimension_numbers<[1], [0], [0], [1], [0, 0, 1, 1], [], []>} : vector<16x128xbf16>, vector<128x1024xbf16>, vector<16x1024xf32> -> vector<16x1024xf32>
    %c0_3 = arith.constant 0 : index
    %c0_4 = arith.constant 0 : index
    %3 = vector.load %arg8[%c0_3, %c0_4] : memref<8x1024xf32, #tpu.memory_space<vmem>>, vector<1x1024xf32>
    %4 = vector.broadcast %3 : vector<1x1024xf32> to vector<16x1024xf32>
    %5 = arith.addf %2, %4 : vector<16x1024xf32>
    %6 = arith.truncf %5 : vector<16x1024xf32> to vector<16x1024xbf16>
    %cst_5 = arith.constant 0.000000e+00 : bf16
    %7 = vector.broadcast %cst_5 : bf16 to vector<16x1024xbf16>
    %8 = arith.cmpf ogt, %6, %7 : vector<16x1024xbf16>
    %cst_6 = arith.constant 1.000980e-02 : bf16
    %9 = vector.broadcast %cst_6 : bf16 to vector<16x1024xbf16>
    %10 = arith.mulf %9, %6 : vector<16x1024xbf16>
    %11 = arith.select %8, %6, %10 : vector<16x1024xi1>, vector<16x1024xbf16>
    %c0_7 = arith.constant 0 : index
    %c0_8 = arith.constant 0 : index
    %12 = vector.load %arg3[%c0_7, %c0_8] : memref<1024x512xbf16, #tpu.memory_space<vmem>>, vector<1024x512xbf16>
    %cst_9 = arith.constant dense<0.000000e+00> : vector<16x512xf32>
    %13 = tpu.matmul %11, %12, %cst_9 {dimension_numbers = #tpu.dot_dimension_numbers<[1], [0], [0], [1], [0, 0, 1, 1], [], []>} : vector<16x1024xbf16>, vector<1024x512xbf16>, vector<16x512xf32> -> vector<16x512xf32>
    %c1 = arith.constant 1 : index
    %c0_10 = arith.constant 0 : index
    %14 = vector.load %arg8[%c1, %c0_10] : memref<8x1024xf32, #tpu.memory_space<vmem>>, vector<1x512xf32>
    %15 = vector.broadcast %14 : vector<1x512xf32> to vector<16x512xf32>
    %16 = arith.addf %13, %15 : vector<16x512xf32>
    %17 = arith.truncf %16 : vector<16x512xf32> to vector<16x512xbf16>
    %cst_11 = arith.constant 0.000000e+00 : bf16
    %18 = vector.broadcast %cst_11 : bf16 to vector<16x512xbf16>
    %19 = arith.cmpf ogt, %17, %18 : vector<16x512xbf16>
    %cst_12 = arith.constant 1.000980e-02 : bf16
    %20 = vector.broadcast %cst_12 : bf16 to vector<16x512xbf16>
    %21 = arith.mulf %20, %17 : vector<16x512xbf16>
    %22 = arith.select %19, %17, %21 : vector<16x512xi1>, vector<16x512xbf16>
    %c0_13 = arith.constant 0 : index
    %c0_14 = arith.constant 0 : index
    %23 = vector.load %arg4[%c0_13, %c0_14] : memref<512x256xbf16, #tpu.memory_space<vmem>>, vector<512x256xbf16>
    %cst_15 = arith.constant dense<0.000000e+00> : vector<16x256xf32>
    %24 = tpu.matmul %22, %23, %cst_15 {dimension_numbers = #tpu.dot_dimension_numbers<[1], [0], [0], [1], [0, 0, 1, 1], [], []>} : vector<16x512xbf16>, vector<512x256xbf16>, vector<16x256xf32> -> vector<16x256xf32>
    %c2 = arith.constant 2 : index
    %c0_16 = arith.constant 0 : index
    %25 = vector.load %arg8[%c2, %c0_16] : memref<8x1024xf32, #tpu.memory_space<vmem>>, vector<1x256xf32>
    %26 = vector.broadcast %25 : vector<1x256xf32> to vector<16x256xf32>
    %27 = arith.addf %24, %26 : vector<16x256xf32>
    %28 = arith.truncf %27 : vector<16x256xf32> to vector<16x256xbf16>
    %cst_17 = arith.constant 0.000000e+00 : bf16
    %29 = vector.broadcast %cst_17 : bf16 to vector<16x256xbf16>
    %30 = arith.cmpf ogt, %28, %29 : vector<16x256xbf16>
    %cst_18 = arith.constant 1.000980e-02 : bf16
    %31 = vector.broadcast %cst_18 : bf16 to vector<16x256xbf16>
    %32 = arith.mulf %31, %28 : vector<16x256xbf16>
    %33 = arith.select %30, %28, %32 : vector<16x256xi1>, vector<16x256xbf16>
    %c0_19 = arith.constant 0 : index
    %c0_20 = arith.constant 0 : index
    %34 = vector.load %arg5[%c0_19, %c0_20] : memref<256x128xbf16, #tpu.memory_space<vmem>>, vector<256x128xbf16>
    %cst_21 = arith.constant dense<0.000000e+00> : vector<16x128xf32>
    %35 = tpu.matmul %33, %34, %cst_21 {dimension_numbers = #tpu.dot_dimension_numbers<[1], [0], [0], [1], [0, 0, 1, 1], [], []>} : vector<16x256xbf16>, vector<256x128xbf16>, vector<16x128xf32> -> vector<16x128xf32>
    %c3 = arith.constant 3 : index
    %c0_22 = arith.constant 0 : index
    %36 = vector.load %arg8[%c3, %c0_22] : memref<8x1024xf32, #tpu.memory_space<vmem>>, vector<1x128xf32>
    %37 = vector.broadcast %36 : vector<1x128xf32> to vector<16x128xf32>
    %38 = arith.addf %35, %37 : vector<16x128xf32>
    %39 = arith.truncf %38 : vector<16x128xf32> to vector<16x128xbf16>
    %cst_23 = arith.constant 0.000000e+00 : bf16
    %40 = vector.broadcast %cst_23 : bf16 to vector<16x128xbf16>
    %41 = arith.cmpf ogt, %39, %40 : vector<16x128xbf16>
    %cst_24 = arith.constant 1.000980e-02 : bf16
    %42 = vector.broadcast %cst_24 : bf16 to vector<16x128xbf16>
    %43 = arith.mulf %42, %39 : vector<16x128xbf16>
    %44 = arith.select %41, %39, %43 : vector<16x128xi1>, vector<16x128xbf16>
    %c0_25 = arith.constant 0 : index
    %c0_26 = arith.constant 0 : index
    %45 = vector.load %arg6[%c0_25, %c0_26] : memref<128x128xbf16, #tpu.memory_space<vmem>>, vector<128x128xbf16>
    %cst_27 = arith.constant dense<0.000000e+00> : vector<16x128xf32>
    %46 = tpu.matmul %44, %45, %cst_27 {dimension_numbers = #tpu.dot_dimension_numbers<[1], [0], [0], [1], [0, 0, 1, 1], [], []>} : vector<16x128xbf16>, vector<128x128xbf16>, vector<16x128xf32> -> vector<16x128xf32>
    %c4 = arith.constant 4 : index
    %c0_28 = arith.constant 0 : index
    %47 = vector.load %arg8[%c4, %c0_28] : memref<8x1024xf32, #tpu.memory_space<vmem>>, vector<1x128xf32>
    %48 = vector.broadcast %47 : vector<1x128xf32> to vector<16x128xf32>
    %49 = arith.addf %46, %48 : vector<16x128xf32>
    %50 = arith.truncf %49 : vector<16x128xf32> to vector<16x128xbf16>
    %cst_29 = arith.constant 0.000000e+00 : bf16
    %51 = vector.broadcast %cst_29 : bf16 to vector<16x128xbf16>
    %52 = arith.cmpf ogt, %50, %51 : vector<16x128xbf16>
    %cst_30 = arith.constant 1.000980e-02 : bf16
    %53 = vector.broadcast %cst_30 : bf16 to vector<16x128xbf16>
    %54 = arith.mulf %53, %50 : vector<16x128xbf16>
    %55 = arith.select %52, %50, %54 : vector<16x128xi1>, vector<16x128xbf16>
    %c0_31 = arith.constant 0 : index
    %c0_32 = arith.constant 0 : index
    %56 = vector.load %arg7[%c0_31, %c0_32] : memref<128x128xbf16, #tpu.memory_space<vmem>>, vector<128x128xbf16>
    %cst_33 = arith.constant dense<0.000000e+00> : vector<16x128xf32>
    %57 = tpu.matmul %55, %56, %cst_33 {dimension_numbers = #tpu.dot_dimension_numbers<[1], [0], [0], [1], [0, 0, 1, 1], [], []>} : vector<16x128xbf16>, vector<128x128xbf16>, vector<16x128xf32> -> vector<16x128xf32>
    %c5 = arith.constant 5 : index
    %c0_34 = arith.constant 0 : index
    %58 = vector.load %arg8[%c5, %c0_34] : memref<8x1024xf32, #tpu.memory_space<vmem>>, vector<1x128xf32>
    %59 = vector.broadcast %58 : vector<1x128xf32> to vector<16x128xf32>
    %60 = arith.addf %57, %59 : vector<16x128xf32>
    %61 = arith.truncf %60 : vector<16x128xf32> to vector<16x128xbf16>
    %c0_35 = arith.constant 0 : index
    %c0_36 = arith.constant 0 : index
    %62 = vector.load %arg9[%c0_35, %c0_36] : memref<16x128xbf16, #tpu.memory_space<vmem>>, vector<16x128xbf16>
    tpu.vector_store %arg9[%c0_35, %c0_36], %61 {strides = array<i32>} : memref<16x128xbf16, #tpu.memory_space<vmem>>, vector<16x128xbf16>,
    return
  }
  func.func @transform_0(%arg0: i32) -> (i32, i32) {
    %c0_i32 = arith.constant 0 : i32
    %c0_i32_0 = arith.constant 0 : i32
    return %arg0, %c0_i32 : i32, i32
  }
  func.func @transform_1(%arg0: i32) -> (i32, i32) {
    %c0_i32 = arith.constant 0 : i32
    %c0_i32_0 = arith.constant 0 : i32
    %c0_i32_1 = arith.constant 0 : i32
    return %c0_i32, %c0_i32_0 : i32, i32
  }
  func.func @transform_2(%arg0: i32) -> (i32, i32) {
    %c0_i32 = arith.constant 0 : i32
    %c0_i32_0 = arith.constant 0 : i32
    %c0_i32_1 = arith.constant 0 : i32
    return %c0_i32, %c0_i32_0 : i32, i32
  }
  func.func @transform_3(%arg0: i32) -> (i32, i32) {
    %c0_i32 = arith.constant 0 : i32
    %c0_i32_0 = arith.constant 0 : i32
    %c0_i32_1 = arith.constant 0 : i32
    return %c0_i32, %c0_i32_0 : i32, i32
  }
  func.func @transform_4(%arg0: i32) -> (i32, i32) {
    %c0_i32 = arith.constant 0 : i32
    %c0_i32_0 = arith.constant 0 : i32
    %c0_i32_1 = arith.constant 0 : i32
    return %c0_i32, %c0_i32_0 : i32, i32
  }
  func.func @transform_5(%arg0: i32) -> (i32, i32) {
    %c0_i32 = arith.constant 0 : i32
    %c0_i32_0 = arith.constant 0 : i32
    %c0_i32_1 = arith.constant 0 : i32
    return %c0_i32, %c0_i32_0 : i32, i32
  }
  func.func @transform_6(%arg0: i32) -> (i32, i32) {
    %c0_i32 = arith.constant 0 : i32
    %c0_i32_0 = arith.constant 0 : i32
    %c0_i32_1 = arith.constant 0 : i32
    return %c0_i32, %c0_i32_0 : i32, i32
  }
  func.func @transform_7(%arg0: i32) -> (i32, i32) {
    %c0_i32 = arith.constant 0 : i32
    %c0_i32_0 = arith.constant 0 : i32
    %c0_i32_1 = arith.constant 0 : i32
    return %c0_i32, %c0_i32_0 : i32, i32
  }
  func.func @transform_8(%arg0: i32) -> (i32, i32) {
    %c0_i32 = arith.constant 0 : i32
    %c0_i32_0 = arith.constant 0 : i32
    return %arg0, %c0_i32 : i32, i32
  }
}

</mosaic_0001>

<llo_original>
// kernel: _forward_impl.1
$region0: #{_forward_impl.1}
  #allocation0 [shape = 'u32[]', space=smem, size = 0x4, offset = 0x4, fixed_abs, tag = 'smem constant byte address 0x4 - core index']
  #allocation1 [shape = 'u32[144,128]{1,0:T(1,128)}', space=vmem, size = 0x12000, scoped, tag = 'internal scratch']
  %s0 = inlined_call_operand.vmem [shape: bf16[16,128], index: 0, kind: input, shape index: {}]
  %s1 = inlined_call_operand.vmem [shape: bf16[128,1024], index: 1, kind: input, shape index: {}]
  %s2 = inlined_call_operand.vmem [shape: bf16[1024,512], index: 2, kind: input, shape index: {}]
  %s3 = inlined_call_operand.vmem [shape: bf16[512,256], index: 3, kind: input, shape index: {}]
  %s4 = inlined_call_operand.vmem [shape: bf16[256,128], index: 4, kind: input, shape index: {}]
  %s5 = inlined_call_operand.vmem [shape: bf16[128,128], index: 5, kind: input, shape index: {}]
  %s6 = inlined_call_operand.vmem [shape: bf16[128,128], index: 6, kind: input, shape index: {}]
  %s7 = inlined_call_operand.vmem [shape: f32[8,1024], index: 7, kind: input, shape index: {}]
  %s8 = inlined_call_operand.vmem [shape: bf16[16,128], index: 8, kind: output, shape index: {}]
  %s9 = sld [smem:[#allocation0]]
  $region42: #{_forward_impl.1} parent=0
    _
  %s11 = ssub.s32 1, %s9
  %s12 = scalar_select 0, %s11, %s9
  // Predicated region
  $region2: #{_forward_impl.1} parent=0 // pred_check
    _
  $region3: #{_forward_impl.1} parent=0 // pred_check_branch
    %14 = sbr.rel (0) target = $region5
  $region4: #{_forward_impl.1} parent=0 // pred_region
    _
  $region5: #{_forward_impl.1} parent=0 // pred_fallthru
    _
  // Predicated region
  $region6: #{_forward_impl.1} parent=0 // pred_check
    _
  $region7: #{_forward_impl.1} parent=0 // pred_check_branch
    %16 = sbr.rel (0) target = $region9
  $region8: #{_forward_impl.1} parent=0 // pred_region
    _
  $region9: #{_forward_impl.1} parent=0 // pred_fallthru
    _
  // Predicated region
  $region10: #{_forward_impl.1} parent=0 // pred_check
    _
  $region11: #{_forward_impl.1} parent=0 // pred_check_branch
    %18 = sbr.rel (0) target = $region13
  $region12: #{_forward_impl.1} parent=0 // pred_region
    _
  $region13: #{_forward_impl.1} parent=0 // pred_fallthru
    _
  // Predicated region
  $region14: #{_forward_impl.1} parent=0 // pred_check
    _
  $region15: #{_forward_impl.1} parent=0 // pred_check_branch
    %20 = sbr.rel (0) target = $region17
  $region16: #{_forward_impl.1} parent=0 // pred_region
    _
  $region17: #{_forward_impl.1} parent=0 // pred_fallthru
    _
  // Predicated region
  $region18: #{_forward_impl.1} parent=0 // pred_check
    _
  $region19: #{_forward_impl.1} parent=0 // pred_check_branch
    %22 = sbr.rel (0) target = $region21
  $region20: #{_forward_impl.1} parent=0 // pred_region
    _
  $region21: #{_forward_impl.1} parent=0 // pred_fallthru
    _
  // Predicated region
  $region22: #{_forward_impl.1} parent=0 // pred_check
    _
  $region23: #{_forward_impl.1} parent=0 // pred_check_branch
    %24 = sbr.rel (0) target = $region25
  $region24: #{_forward_impl.1} parent=0 // pred_region
    _
  $region25: #{_forward_impl.1} parent=0 // pred_fallthru
    _
  // Predicated region
  $region26: #{_forward_impl.1} parent=0 // pred_check
    _
  $region27: #{_forward_impl.1} parent=0 // pred_check_branch
    %26 = sbr.rel (0) target = $region29
  $region28: #{_forward_impl.1} parent=0 // pred_region
    _
  $region29: #{_forward_impl.1} parent=0 // pred_fallthru
    _
  // Predicated region
  $region30: #{_forward_impl.1} parent=0 // pred_check
    _
  $region31: #{_forward_impl.1} parent=0 // pred_check_branch
    %28 = sbr.rel (0) target = $region33
  $region32: #{_forward_impl.1} parent=0 // pred_region
    _
  $region33: #{_forward_impl.1} parent=0 // pred_fallthru
    _
  %v31 = vld [vmem:[%s0] sm:$0xf]
  %v32 = vld [vmem:[%s0 + $0x4] sm:$0xf]
  %v33 = vld [vmem:[%s1] sm:$0xff]
  %v34 = vld [vmem:[%s1 + $0x8] sm:$0xff]
  %v35 = vld [vmem:[%s1 + $0x10] sm:$0xff]
  %v36 = vld [vmem:[%s1 + $0x18] sm:$0xff]
  %v37 = vld [vmem:[%s1 + $0x20] sm:$0xff]
  %v38 = vld [vmem:[%s1 + $0x28] sm:$0xff]
  %v39 = vld [vmem:[%s1 + $0x30] sm:$0xff]
  %v40 = vld [vmem:[%s1 + $0x38] sm:$0xff]
  %v41 = vld [vmem:[%s1 + $0x40] sm:$0xff]
  %v42 = vld [vmem:[%s1 + $0x48] sm:$0xff]
  %v43 = vld [vmem:[%s1 + $0x50] sm:$0xff]
  %v44 = vld [vmem:[%s1 + $0x58] sm:$0xff]
  %v45 = vld [vmem:[%s1 + $0x60] sm:$0xff]
  %v46 = vld [vmem:[%s1 + $0x68] sm:$0xff]
  %v47 = vld [vmem:[%s1 + $0x70] sm:$0xff]
  %v48 = vld [vmem:[%s1 + $0x78] sm:$0xff]
  %v49 = vld [vmem:[%s1 + $0x80] sm:$0xff]
  %v50 = vld [vmem:[%s1 + $0x88] sm:$0xff]
  %v51 = vld [vmem:[%s1 + $0x90] sm:$0xff]
  %v52 = vld [vmem:[%s1 + $0x98] sm:$0xff]
  %v53 = vld [vmem:[%s1 + $0xa0] sm:$0xff]
  %v54 = vld [vmem:[%s1 + $0xa8] sm:$0xff]
  %v55 = vld [vmem:[%s1 + $0xb0] sm:$0xff]
  %v56 = vld [vmem:[%s1 + $0xb8] sm:$0xff]
  %v57 = vld [vmem:[%s1 + $0xc0] sm:$0xff]
  %v58 = vld [vmem:[%s1 + $0xc8] sm:$0xff]
  %v59 = vld [vmem:[%s1 + $0xd0] sm:$0xff]
  %v60 = vld [vmem:[%s1 + $0xd8] sm:$0xff]
  %v61 = vld [vmem:[%s1 + $0xe0] sm:$0xff]
  %v62 = vld [vmem:[%s1 + $0xe8] sm:$0xff]
  %v63 = vld [vmem:[%s1 + $0xf0] sm:$0xff]
  %v64 = vld [vmem:[%s1 + $0xf8] sm:$0xff]
  %v65 = vld [vmem:[%s1 + $0x100] sm:$0xff]
  %v66 = vld [vmem:[%s1 + $0x108] sm:$0xff]
  %v67 = vld [vmem:[%s1 + $0x110] sm:$0xff]
  %v68 = vld [vmem:[%s1 + $0x118] sm:$0xff]
  %v69 = vld [vmem:[%s1 + $0x120] sm:$0xff]
  %v70 = vld [vmem:[%s1 + $0x128] sm:$0xff]
  %v71 = vld [vmem:[%s1 + $0x130] sm:$0xff]
  %v72 = vld [vmem:[%s1 + $0x138] sm:$0xff]
  %v73 = vld [vmem:[%s1 + $0x140] sm:$0xff]
  %v74 = vld [vmem:[%s1 + $0x148] sm:$0xff]
  %v75 = vld [vmem:[%s1 + $0x150] sm:$0xff]
  %v76 = vld [vmem:[%s1 + $0x158] sm:$0xff]
  %v77 = vld [vmem:[%s1 + $0x160] sm:$0xff]
  %v78 = vld [vmem:[%s1 + $0x168] sm:$0xff]
  %v79 = vld [vmem:[%s1 + $0x170] sm:$0xff]
  %v80 = vld [vmem:[%s1 + $0x178] sm:$0xff]
  %v81 = vld [vmem:[%s1 + $0x180] sm:$0xff]
  %v82 = vld [vmem:[%s1 + $0x188] sm:$0xff]
  %v83 = vld [vmem:[%s1 + $0x190] sm:$0xff]
  %v84 = vld [vmem:[%s1 + $0x198] sm:$0xff]
  %v85 = vld [vmem:[%s1 + $0x1a0] sm:$0xff]
  %v86 = vld [vmem:[%s1 + $0x1a8] sm:$0xff]
  %v87 = vld [vmem:[%s1 + $0x1b0] sm:$0xff]
  %v88 = vld [vmem:[%s1 + $0x1b8] sm:$0xff]
  %v89 = vld [vmem:[%s1 + $0x1c0] sm:$0xff]
  %v90 = vld [vmem:[%s1 + $0x1c8] sm:$0xff]
  %v91 = vld [vmem:[%s1 + $0x1d0] sm:$0xff]
  %v92 = vld [vmem:[%s1 + $0x1d8] sm:$0xff]
  %v93 = vld [vmem:[%s1 + $0x1e0] sm:$0xff]
  %v94 = vld [vmem:[%s1 + $0x1e8] sm:$0xff]
  %v95 = vld [vmem:[%s1 + $0x1f0] sm:$0xff]
  %v96 = vld [vmem:[%s1 + $0x1f8] sm:$0xff]
  %v97 = vld [vmem:[%s7] ss:$8 sm:$0xf]
  %v98 = vld [vmem:[%s7] ss:$8 sm:$0xf0]
  %v99 = vor.u32 %v97, %v98
  %v101 = vlaneseq
  %v102 = vshrl.u32 %v101, 7
  %v103 = vsub.s32 0, %v102
  %v104 = vrot.slane %v99, %v103
  %v105 = vlaneseq
  %v106 = vshrl.u32 %v105, 7
  %v107 = vsub.s32 1, %v106
  %v108 = vrot.slane %v99, %v107
  %v109 = vlaneseq
  %v110 = vshrl.u32 %v109, 7
  %v111 = vsub.s32 2, %v110
  %v112 = vrot.slane %v99, %v111
  %v113 = vlaneseq
  %v114 = vshrl.u32 %v113, 7
  %v115 = vsub.s32 3, %v114
  %v116 = vrot.slane %v99, %v115
  %v117 = vlaneseq
  %v118 = vshrl.u32 %v117, 7
  %v119 = vsub.s32 4, %v118
  %v120 = vrot.slane %v99, %v119
  %v121 = vlaneseq
  %v122 = vshrl.u32 %v121, 7
  %v123 = vsub.s32 5, %v122
  %v124 = vrot.slane %v99, %v123
  %v125 = vlaneseq
  %v126 = vshrl.u32 %v125, 7
  %v127 = vsub.s32 6, %v126
  %v128 = vrot.slane %v99, %v127
  %v129 = vlaneseq
  %v130 = vshrl.u32 %v129, 7
  %v131 = vsub.s32 7, %v130
  %v132 = vrot.slane %v99, %v131
  %v143 = vunpack.c.l.b16 %v31
  %v144 = vunpack.c.l.b16 %v32
  %v145 = vpack.c.b16 %v144, %v143
  %v211 = vunpack.c.l.b16 %v33
  %v212 = vunpack.c.h.b16 %v33
  %v213 = vunpack.c.l.b16 %v34
  %v214 = vunpack.c.h.b16 %v34
  %v215 = vunpack.c.l.b16 %v35
  %v216 = vunpack.c.h.b16 %v35
  %v217 = vunpack.c.l.b16 %v36
  %v218 = vunpack.c.h.b16 %v36
  %v219 = vunpack.c.l.b16 %v37
  %v220 = vunpack.c.h.b16 %v37
  %v221 = vunpack.c.l.b16 %v38
  %v222 = vunpack.c.h.b16 %v38
  %v223 = vunpack.c.l.b16 %v39
  %v224 = vunpack.c.h.b16 %v39
  %v225 = vunpack.c.l.b16 %v40
  %v226 = vunpack.c.h.b16 %v40
  %v227 = vunpack.c.l.b16 %v41
  %v228 = vunpack.c.h.b16 %v41
  %v229 = vunpack.c.l.b16 %v42
  %v230 = vunpack.c.h.b16 %v42
  %v231 = vunpack.c.l.b16 %v43
  %v232 = vunpack.c.h.b16 %v43
  %v233 = vunpack.c.l.b16 %v44
  %v234 = vunpack.c.h.b16 %v44
  %v235 = vunpack.c.l.b16 %v45
  %v236 = vunpack.c.h.b16 %v45
  %v237 = vunpack.c.l.b16 %v46
  %v238 = vunpack.c.h.b16 %v46
  %v239 = vunpack.c.l.b16 %v47
  %v240 = vunpack.c.h.b16 %v47
  %v241 = vunpack.c.l.b16 %v48
  %v242 = vunpack.c.h.b16 %v48
  %v243 = vunpack.c.l.b16 %v49
  %v244 = vunpack.c.h.b16 %v49
  %v245 = vunpack.c.l.b16 %v50
  %v246 = vunpack.c.h.b16 %v50
  %v247 = vunpack.c.l.b16 %v51
  %v248 = vunpack.c.h.b16 %v51
  %v249 = vunpack.c.l.b16 %v52
  %v250 = vunpack.c.h.b16 %v52
  %v251 = vunpack.c.l.b16 %v53
  %v252 = vunpack.c.h.b16 %v53
  %v253 = vunpack.c.l.b16 %v54
  %v254 = vunpack.c.h.b16 %v54
  %v255 = vunpack.c.l.b16 %v55
  %v256 = vunpack.c.h.b16 %v55
  %v257 = vunpack.c.l.b16 %v56
  %v258 = vunpack.c.h.b16 %v56
  %v259 = vunpack.c.l.b16 %v57
  %v260 = vunpack.c.h.b16 %v57
  %v261 = vunpack.c.l.b16 %v58
  %v262 = vunpack.c.h.b16 %v58
  %v263 = vunpack.c.l.b16 %v59
  %v264 = vunpack.c.h.b16 %v59
  %v265 = vunpack.c.l.b16 %v60
  %v266 = vunpack.c.h.b16 %v60
  %v267 = vunpack.c.l.b16 %v61
  %v268 = vunpack.c.h.b16 %v61
  %v269 = vunpack.c.l.b16 %v62
  %v270 = vunpack.c.h.b16 %v62
  %v271 = vunpack.c.l.b16 %v63
  %v272 = vunpack.c.h.b16 %v63
  %v273 = vunpack.c.l.b16 %v64
  %v274 = vunpack.c.h.b16 %v64
  %v275 = vunpack.c.l.b16 %v65
  %v276 = vunpack.c.h.b16 %v65
  %v277 = vunpack.c.l.b16 %v66
  %v278 = vunpack.c.h.b16 %v66
  %v279 = vunpack.c.l.b16 %v67
  %v280 = vunpack.c.h.b16 %v67
  %v281 = vunpack.c.l.b16 %v68
  %v282 = vunpack.c.h.b16 %v68
  %v283 = vunpack.c.l.b16 %v69
  %v284 = vunpack.c.h.b16 %v69
  %v285 = vunpack.c.l.b16 %v70
  %v286 = vunpack.c.h.b16 %v70
  %v287 = vunpack.c.l.b16 %v71
  %v288 = vunpack.c.h.b16 %v71
  %v289 = vunpack.c.l.b16 %v72
  %v290 = vunpack.c.h.b16 %v72
  %v291 = vunpack.c.l.b16 %v73
  %v292 = vunpack.c.h.b16 %v73
  %v293 = vunpack.c.l.b16 %v74
  %v294 = vunpack.c.h.b16 %v74
  %v295 = vunpack.c.l.b16 %v75
  %v296 = vunpack.c.h.b16 %v75
  %v297 = vunpack.c.l.b16 %v76
  %v298 = vunpack.c.h.b16 %v76
  %v299 = vunpack.c.l.b16 %v77
  %v300 = vunpack.c.h.b16 %v77
  %v301 = vunpack.c.l.b16 %v78
  %v302 = vunpack.c.h.b16 %v78
  %v303 = vunpack.c.l.b16 %v79
  %v304 = vunpack.c.h.b16 %v79
  %v305 = vunpack.c.l.b16 %v80
  %v306 = vunpack.c.h.b16 %v80
  %v307 = vunpack.c.l.b16 %v81
  %v308 = vunpack.c.h.b16 %v81
  %v309 = vunpack.c.l.b16 %v82
  %v310 = vunpack.c.h.b16 %v82
  %v311 = vunpack.c.l.b16 %v83
  %v312 = vunpack.c.h.b16 %v83
  %v313 = vunpack.c.l.b16 %v84
  %v314 = vunpack.c.h.b16 %v84
  %v315 = vunpack.c.l.b16 %v85
  %v316 = vunpack.c.h.b16 %v85
  %v317 = vunpack.c.l.b16 %v86
  %v318 = vunpack.c.h.b16 %v86
  %v319 = vunpack.c.l.b16 %v87
  %v320 = vunpack.c.h.b16 %v87
  %v321 = vunpack.c.l.b16 %v88
  %v322 = vunpack.c.h.b16 %v88
  %v323 = vunpack.c.l.b16 %v89
  %v324 = vunpack.c.h.b16 %v89
  %v325 = vunpack.c.l.b16 %v90
  %v326 = vunpack.c.h.b16 %v90
  %v327 = vunpack.c.l.b16 %v91
  %v328 = vunpack.c.h.b16 %v91
  %v329 = vunpack.c.l.b16 %v92
  %v330 = vunpack.c.h.b16 %v92
  %v331 = vunpack.c.l.b16 %v93
  %v332 = vunpack.c.h.b16 %v93
  %v333 = vunpack.c.l.b16 %v94
  %v334 = vunpack.c.h.b16 %v94
  %v335 = vunpack.c.l.b16 %v95
  %v336 = vunpack.c.h.b16 %v95
  %v337 = vunpack.c.l.b16 %v96
  %v338 = vunpack.c.h.b16 %v96
  %v339 = vpack.c.b16 %v219, %v211
  %v340 = vpack.c.b16 %v220, %v212
  %v341 = vpack.c.b16 %v221, %v213
  %v342 = vpack.c.b16 %v222, %v214
  %v343 = vpack.c.b16 %v223, %v215
  %v344 = vpack.c.b16 %v224, %v216
  %v345 = vpack.c.b16 %v225, %v217
  %v346 = vpack.c.b16 %v226, %v218
  %v347 = vpack.c.b16 %v235, %v227
  %v348 = vpack.c.b16 %v236, %v228
  %v349 = vpack.c.b16 %v237, %v229
  %v350 = vpack.c.b16 %v238, %v230
  %v351 = vpack.c.b16 %v239, %v231
  %v352 = vpack.c.b16 %v240, %v232
  %v353 = vpack.c.b16 %v241, %v233
  %v354 = vpack.c.b16 %v242, %v234
  %v355 = vpack.c.b16 %v251, %v243
  %v356 = vpack.c.b16 %v252, %v244
  %v357 = vpack.c.b16 %v253, %v245
  %v358 = vpack.c.b16 %v254, %v246
  %v359 = vpack.c.b16 %v255, %v247
  %v360 = vpack.c.b16 %v256, %v248
  %v361 = vpack.c.b16 %v257, %v249
  %v362 = vpack.c.b16 %v258, %v250
  %v363 = vpack.c.b16 %v267, %v259
  %v364 = vpack.c.b16 %v268, %v260
  %v365 = vpack.c.b16 %v269, %v261
  %v366 = vpack.c.b16 %v270, %v262
  %v367 = vpack.c.b16 %v271, %v263
  %v368 = vpack.c.b16 %v272, %v264
  %v369 = vpack.c.b16 %v273, %v265
  %v370 = vpack.c.b16 %v274, %v266
  %v371 = vpack.c.b16 %v283, %v275
  %v372 = vpack.c.b16 %v284, %v276
  %v373 = vpack.c.b16 %v285, %v277
  %v374 = vpack.c.b16 %v286, %v278
  %v375 = vpack.c.b16 %v287, %v279
  %v376 = vpack.c.b16 %v288, %v280
  %v377 = vpack.c.b16 %v289, %v281
  %v378 = vpack.c.b16 %v290, %v282
  %v379 = vpack.c.b16 %v299, %v291
  %v380 = vpack.c.b16 %v300, %v292
  %v381 = vpack.c.b16 %v301, %v293
  %v382 = vpack.c.b16 %v302, %v294
  %v383 = vpack.c.b16 %v303, %v295
  %v384 = vpack.c.b16 %v304, %v296
  %v385 = vpack.c.b16 %v305, %v297
  %v386 = vpack.c.b16 %v306, %v298
  %v387 = vpack.c.b16 %v315, %v307
  %v388 = vpack.c.b16 %v316, %v308
  %v389 = vpack.c.b16 %v317, %v309
  %v390 = vpack.c.b16 %v318, %v310
  %v391 = vpack.c.b16 %v319, %v311
  %v392 = vpack.c.b16 %v320, %v312
  %v393 = vpack.c.b16 %v321, %v313
  %v394 = vpack.c.b16 %v322, %v314
  %v395 = vpack.c.b16 %v331, %v323
  %v396 = vpack.c.b16 %v332, %v324
  %v397 = vpack.c.b16 %v333, %v325
  %v398 = vpack.c.b16 %v334, %v326
  %v399 = vpack.c.b16 %v335, %v327
  %v400 = vpack.c.b16 %v336, %v328
  %v401 = vpack.c.b16 %v337, %v329
  %v402 = vpack.c.b16 %v338, %v330
  %467 = vmatprep.subr.bf16.mxu0 %v340
  %468 = vmatpush1.bf16.msra.mxu0 %v339
  %469 = vmatprep.subr.bf16.mxu0 %v348
  %470 = vmatpush1.bf16.msra.mxu0 %v347
  %471 = vmatprep.subr.bf16.mxu0 %v356
  %472 = vmatpush1.bf16.msra.mxu0 %v355
  %473 = vmatprep.subr.bf16.mxu0 %v364
  %474 = vmatpush1.bf16.msra.mxu0 %v363
  %475 = vmatprep.subr.bf16.mxu0 %v372
  %476 = vmatpush1.bf16.msra.mxu0 %v371
  %477 = vmatprep.subr.bf16.mxu0 %v380
  %478 = vmatpush1.bf16.msra.mxu0 %v379
  %479 = vmatprep.subr.bf16.mxu0 %v388
  %480 = vmatpush1.bf16.msra.mxu0 %v387
  %481 = vmatprep.subr.bf16.mxu0 %v396
  %482 = vmatpush1.bf16.msra.mxu0 %v395
  %483 = vmatprep.subr.bf16.mxu0 0
  %484 = vmatpush1.bf16.msra.mxu0 0
  %485 = vmatprep.subr.bf16.mxu0 0
  %486 = vmatpush1.bf16.msra.mxu0 0
  %487 = vmatprep.subr.bf16.mxu0 0
  %488 = vmatpush1.bf16.msra.mxu0 0
  %489 = vmatprep.subr.bf16.mxu0 0
  %490 = vmatpush1.bf16.msra.mxu0 0
  %491 = vmatprep.subr.bf16.mxu0 0
  %492 = vmatpush1.bf16.msra.mxu0 0
  %493 = vmatprep.subr.bf16.mxu0 0
  %494 = vmatpush1.bf16.msra.mxu0 0
  %495 = vmatprep.subr.bf16.mxu0 0
  %496 = vmatpush1.bf16.msra.mxu0 0
  %497 = vmatprep.subr.bf16.mxu0 0
  %498 = vmatpush1.bf16.msra.mxu0 0
  %499 = vmatprep.mubr.bf16.mxu0 0
  %500 = vmatmul.mubr.bf16.gmra.mrb[0].mxu0 %v145
  %v501 = vpop.f32.mrb[0].mxu0
  %v502 = vadd.f32 %v104, %v501
  %v503 = vpop.f32.mrb[0].mxu0
  %v504 = vadd.f32 %v108, %v503
  %v505 = vpop.f32.mrb[0].mxu0
  %v506 = vadd.f32 %v104, %v505
  %v507 = vpop.f32.mrb[0].mxu0
  %v508 = vadd.f32 %v108, %v507
  %509 = vdwg.mxu0
  %510 = vmatprep.subr.bf16.mxu0 %v342
  %511 = vmatpush1.bf16.msra.mxu0 %v341
  %512 = vmatprep.subr.bf16.mxu0 %v350
  %513 = vmatpush1.bf16.msra.mxu0 %v349
  %514 = vmatprep.subr.bf16.mxu0 %v358
  %515 = vmatpush1.bf16.msra.mxu0 %v357
  %516 = vmatprep.subr.bf16.mxu0 %v366
  %517 = vmatpush1.bf16.msra.mxu0 %v365
  %518 = vmatprep.subr.bf16.mxu0 %v374
  %519 = vmatpush1.bf16.msra.mxu0 %v373
  %520 = vmatprep.subr.bf16.mxu0 %v382
  %521 = vmatpush1.bf16.msra.mxu0 %v381
  %522 = vmatprep.subr.bf16.mxu0 %v390
  %523 = vmatpush1.bf16.msra.mxu0 %v389
  %524 = vmatprep.subr.bf16.mxu0 %v398
  %525 = vmatpush1.bf16.msra.mxu0 %v397
  %526 = vmatprep.subr.bf16.mxu0 0
  %527 = vmatpush1.bf16.msra.mxu0 0
  %528 = vmatprep.subr.bf16.mxu0 0
  %529 = vmatpush1.bf16.msra.mxu0 0
  %530 = vmatprep.subr.bf16.mxu0 0
  %531 = vmatpush1.bf16.msra.mxu0 0
  %532 = vmatprep.subr.bf16.mxu0 0
  %533 = vmatpush1.bf16.msra.mxu0 0
  %534 = vmatprep.subr.bf16.mxu0 0
  %535 = vmatpush1.bf16.msra.mxu0 0
  %536 = vmatprep.subr.bf16.mxu0 0
  %537 = vmatpush1.bf16.msra.mxu0 0
  %538 = vmatprep.subr.bf16.mxu0 0
  %539 = vmatpush1.bf16.msra.mxu0 0
  %540 = vmatprep.subr.bf16.mxu0 0
  %541 = vmatpush1.bf16.msra.mxu0 0
  %542 = vmatprep.mubr.bf16.mxu0 0
  %543 = vmatmul.mubr.bf16.gmra.mrb[0].mxu0 %v145
  %v544 = vpop.f32.mrb[0].mxu0
  %v545 = vadd.f32 %v112, %v544
  %v546 = vpop.f32.mrb[0].mxu0
  %v547 = vadd.f32 %v116, %v546
  %v548 = vpop.f32.mrb[0].mxu0
  %v549 = vadd.f32 %v112, %v548
  %v550 = vpop.f32.mrb[0].mxu0
  %v551 = vadd.f32 %v116, %v550
  %552 = vdwg.mxu0
  %553 = vmatprep.subr.bf16.mxu0 %v344
  %554 = vmatpush1.bf16.msra.mxu0 %v343
  %555 = vmatprep.subr.bf16.mxu0 %v352
  %556 = vmatpush1.bf16.msra.mxu0 %v351
  %557 = vmatprep.subr.bf16.mxu0 %v360
  %558 = vmatpush1.bf16.msra.mxu0 %v359
  %559 = vmatprep.subr.bf16.mxu0 %v368
  %560 = vmatpush1.bf16.msra.mxu0 %v367
  %561 = vmatprep.subr.bf16.mxu0 %v376
  %562 = vmatpush1.bf16.msra.mxu0 %v375
  %563 = vmatprep.subr.bf16.mxu0 %v384
  %564 = vmatpush1.bf16.msra.mxu0 %v383
  %565 = vmatprep.subr.bf16.mxu0 %v392
  %566 = vmatpush1.bf16.msra.mxu0 %v391
  %567 = vmatprep.subr.bf16.mxu0 %v400
  %568 = vmatpush1.bf16.msra.mxu0 %v399
  %569 = vmatprep.subr.bf16.mxu0 0
  %570 = vmatpush1.bf16.msra.mxu0 0
  %571 = vmatprep.subr.bf16.mxu0 0
  %572 = vmatpush1.bf16.msra.mxu0 0
  %573 = vmatprep.subr.bf16.mxu0 0
  %574 = vmatpush1.bf16.msra.mxu0 0
  %575 = vmatprep.subr.bf16.mxu0 0
  %576 = vmatpush1.bf16.msra.mxu0 0
  %577 = vmatprep.subr.bf16.mxu0 0
  %578 = vmatpush1.bf16.msra.mxu0 0
  %579 = vmatprep.subr.bf16.mxu0 0
  %580 = vmatpush1.bf16.msra.mxu0 0
  %581 = vmatprep.subr.bf16.mxu0 0
  %582 = vmatpush1.bf16.msra.mxu0 0
  %583 = vmatprep.subr.bf16.mxu0 0
  %584 = vmatpush1.bf16.msra.mxu0 0
  %585 = vmatprep.mubr.bf16.mxu0 0
  %586 = vmatmul.mubr.bf16.gmra.mrb[0].mxu0 %v145
  %v587 = vpop.f32.mrb[0].mxu0
  %v588 = vadd.f32 %v120, %v587
  %v589 = vpop.f32.mrb[0].mxu0
  %v590 = vadd.f32 %v124, %v589
  %v591 = vpop.f32.mrb[0].mxu0
  %v592 = vadd.f32 %v120, %v591
  %v593 = vpop.f32.mrb[0].mxu0
  %v594 = vadd.f32 %v124, %v593
  %595 = vdwg.mxu0
  %596 = vmatprep.subr.bf16.mxu0 %v346
  %597 = vmatpush1.bf16.msra.mxu0 %v345
  %598 = vmatprep.subr.bf16.mxu0 %v354
  %599 = vmatpush1.bf16.msra.mxu0 %v353
  %600 = vmatprep.subr.bf16.mxu0 %v362
  %601 = vmatpush1.bf16.msra.mxu0 %v361
  %602 = vmatprep.subr.bf16.mxu0 %v370
  %603 = vmatpush1.bf16.msra.mxu0 %v369
  %604 = vmatprep.subr.bf16.mxu0 %v378
  %605 = vmatpush1.bf16.msra.mxu0 %v377
  %606 = vmatprep.subr.bf16.mxu0 %v386
  %607 = vmatpush1.bf16.msra.mxu0 %v385
  %608 = vmatprep.subr.bf16.mxu0 %v394
  %609 = vmatpush1.bf16.msra.mxu0 %v393
  %610 = vmatprep.subr.bf16.mxu0 %v402
  %611 = vmatpush1.bf16.msra.mxu0 %v401
  %612 = vmatprep.subr.bf16.mxu0 0
  %613 = vmatpush1.bf16.msra.mxu0 0
  %614 = vmatprep.subr.bf16.mxu0 0
  %615 = vmatpush1.bf16.msra.mxu0 0
  %616 = vmatprep.subr.bf16.mxu0 0
  %617 = vmatpush1.bf16.msra.mxu0 0
  %618 = vmatprep.subr.bf16.mxu0 0
  %619 = vmatpush1.bf16.msra.mxu0 0
  %620 = vmatprep.subr.bf16.mxu0 0
  %621 = vmatpush1.bf16.msra.mxu0 0
  %622 = vmatprep.subr.bf16.mxu0 0
  %623 = vmatpush1.bf16.msra.mxu0 0
  %624 = vmatprep.subr.bf16.mxu0 0
  %625 = vmatpush1.bf16.msra.mxu0 0
  %626 = vmatprep.subr.bf16.mxu0 0
  %627 = vmatpush1.bf16.msra.mxu0 0
  %628 = vmatprep.mubr.bf16.mxu0 0
  %629 = vmatmul.mubr.bf16.gmra.mrb[0].mxu0 %v145
  %v630 = vpop.f32.mrb[0].mxu0
  %v631 = vadd.f32 %v128, %v630
  %v632 = vpop.f32.mrb[0].mxu0
  %v633 = vadd.f32 %v132, %v632
  %v634 = vpop.f32.mrb[0].mxu0
  %v635 = vadd.f32 %v128, %v634
  %v636 = vpop.f32.mrb[0].mxu0
  %v637 = vadd.f32 %v132, %v636
  %638 = vdwg.mxu0
  %v639 = vpack.c.bf16 %v506, %v502
  %v640 = vpack.c.bf16 %v508, %v504
  %v641 = vpack.c.bf16 %v549, %v545
  %v642 = vpack.c.bf16 %v551, %v547
  %v643 = vpack.c.bf16 %v592, %v588
  %v644 = vpack.c.bf16 %v594, %v590
  %v645 = vpack.c.bf16 %v635, %v631
  %v646 = vpack.c.bf16 %v637, %v633
  %vm647 = vcmp.gt.bf16.partialorder %v639, 0
  %vm648 = vcmp.gt.bf16.partialorder %v640, 0
  %vm649 = vcmp.gt.bf16.partialorder %v641, 0
  %vm650 = vcmp.gt.bf16.partialorder %v642, 0
  %vm651 = vcmp.gt.bf16.partialorder %v643, 0
  %vm652 = vcmp.gt.bf16.partialorder %v644, 0
  %vm653 = vcmp.gt.bf16.partialorder %v645, 0
  %vm654 = vcmp.gt.bf16.partialorder %v646, 0
  %v655 = vmul.bf16 %v639, 1009007652
  %v656 = vmul.bf16 %v640, 1009007652
  %v657 = vmul.bf16 %v641, 1009007652
  %v658 = vmul.bf16 %v642, 1009007652
  %v659 = vmul.bf16 %v643, 1009007652
  %v660 = vmul.bf16 %v644, 1009007652
  %v661 = vmul.bf16 %v645, 1009007652
  %v662 = vmul.bf16 %v646, 1009007652
  %v663 = vsel %vm647, %v639, %v655
  %v664 = vsel %vm648, %v640, %v656
  %v665 = vsel %vm649, %v641, %v657
  %v666 = vsel %vm650, %v642, %v658
  %v667 = vsel %vm651, %v643, %v659
  %v668 = vsel %vm652, %v644, %v660
  %v669 = vsel %vm653, %v645, %v661
  %v670 = vsel %vm654, %v646, %v662
  %v671 = vld [vmem:[%s2] sm:$0xff]
  %v672 = vld [vmem:[%s2 + $0x8] sm:$0xff]
  %v673 = vld [vmem:[%s2 + $0x10] sm:$0xff]
  %v674 = vld [vmem:[%s2 + $0x18] sm:$0xff]
  %v675 = vld [vmem:[%s2 + $0x20] sm:$0xff]
  %v676 = vld [vmem:[%s2 + $0x28] sm:$0xff]
  %v677 = vld [vmem:[%s2 + $0x30] sm:$0xff]
  %v678 = vld [vmem:[%s2 + $0x38] sm:$0xff]
  %v679 = vld [vmem:[%s2 + $0x40] sm:$0xff]
  %v680 = vld [vmem:[%s2 + $0x48] sm:$0xff]
  %v681 = vld [vmem:[%s2 + $0x50] sm:$0xff]
  %v682 = vld [vmem:[%s2 + $0x58] sm:$0xff]
  %v683 = vld [vmem:[%s2 + $0x60] sm:$0xff]
  %v684 = vld [vmem:[%s2 + $0x68] sm:$0xff]
  %v685 = vld [vmem:[%s2 + $0x70] sm:$0xff]
  %v686 = vld [vmem:[%s2 + $0x78] sm:$0xff]
  %v687 = vld [vmem:[%s2 + $0x80] sm:$0xff]
  %v688 = vld [vmem:[%s2 + $0x88] sm:$0xff]
  %v689 = vld [vmem:[%s2 + $0x90] sm:$0xff]
  %v690 = vld [vmem:[%s2 + $0x98] sm:$0xff]
  %v691 = vld [vmem:[%s2 + $0xa0] sm:$0xff]
  %v692 = vld [vmem:[%s2 + $0xa8] sm:$0xff]
  %v693 = vld [vmem:[%s2 + $0xb0] sm:$0xff]
  %v694 = vld [vmem:[%s2 + $0xb8] sm:$0xff]
  %v695 = vld [vmem:[%s2 + $0xc0] sm:$0xff]
  %v696 = vld [vmem:[%s2 + $0xc8] sm:$0xff]
  %v697 = vld [vmem:[%s2 + $0xd0] sm:$0xff]
  %v698 = vld [vmem:[%s2 + $0xd8] sm:$0xff]
  %v699 = vld [vmem:[%s2 + $0xe0] sm:$0xff]
  %v700 = vld [vmem:[%s2 + $0xe8] sm:$0xff]
  %v701 = vld [vmem:[%s2 + $0xf0] sm:$0xff]
  %v702 = vld [vmem:[%s2 + $0xf8] sm:$0xff]
  %v703 = vld [vmem:[%s2 + $0x100] sm:$0xff]
  %v704 = vld [vmem:[%s2 + $0x108] sm:$0xff]
  %v705 = vld [vmem:[%s2 + $0x110] sm:$0xff]
  %v706 = vld [vmem:[%s2 + $0x118] sm:$0xff]
  %v707 = vld [vmem:[%s2 + $0x120] sm:$0xff]
  %v708 = vld [vmem:[%s2 + $0x128] sm:$0xff]
  %v709 = vld [vmem:[%s2 + $0x130] sm:$0xff]
  %v710 = vld [vmem:[%s2 + $0x138] sm:$0xff]
  %v711 = vld [vmem:[%s2 + $0x140] sm:$0xff]
  %v712 = vld [vmem:[%s2 + $0x148] sm:$0xff]
  %v713 = vld [vmem:[%s2 + $0x150] sm:$0xff]
  %v714 = vld [vmem:[%s2 + $0x158] sm:$0xff]
  %v715 = vld [vmem:[%s2 + $0x160] sm:$0xff]
  %v716 = vld [vmem:[%s2 + $0x168] sm:$0xff]
  %v717 = vld [vmem:[%s2 + $0x170] sm:$0xff]
  %v718 = vld [vmem:[%s2 + $0x178] sm:$0xff]
  %v719 = vld [vmem:[%s2 + $0x180] sm:$0xff]
  %v720 = vld [vmem:[%s2 + $0x188] sm:$0xff]
  %v721 = vld [vmem:[%s2 + $0x190] sm:$0xff]
  %v722 = vld [vmem:[%s2 + $0x198] sm:$0xff]
  %v723 = vld [vmem:[%s2 + $0x1a0] sm:$0xff]
  %v724 = vld [vmem:[%s2 + $0x1a8] sm:$0xff]
  %v725 = vld [vmem:[%s2 + $0x1b0] sm:$0xff]
  %v726 = vld [vmem:[%s2 + $0x1b8] sm:$0xff]
  %v727 = vld [vmem:[%s2 + $0x1c0] sm:$0xff]
  %v728 = vld [vmem:[%s2 + $0x1c8] sm:$0xff]
  %v729 = vld [vmem:[%s2 + $0x1d0] sm:$0xff]
  %v730 = vld [vmem:[%s2 + $0x1d8] sm:$0xff]
  %v731 = vld [vmem:[%s2 + $0x1e0] sm:$0xff]
  %v732 = vld [vmem:[%s2 + $0x1e8] sm:$0xff]
  %v733 = vld [vmem:[%s2 + $0x1f0] sm:$0xff]
  %v734 = vld [vmem:[%s2 + $0x1f8] sm:$0xff]
  %v735 = vld [vmem:[%s2 + $0x200] sm:$0xff]
  %v736 = vld [vmem:[%s2 + $0x208] sm:$0xff]
  %v737 = vld [vmem:[%s2 + $0x210] sm:$0xff]
  %v738 = vld [vmem:[%s2 + $0x218] sm:$0xff]
  %v739 = vld [vmem:[%s2 + $0x220] sm:$0xff]
  %v740 = vld [vmem:[%s2 + $0x228] sm:$0xff]
  %v741 = vld [vmem:[%s2 + $0x230] sm:$0xff]
  %v742 = vld [vmem:[%s2 + $0x238] sm:$0xff]
  %v743 = vld [vmem:[%s2 + $0x240] sm:$0xff]
  %v744 = vld [vmem:[%s2 + $0x248] sm:$0xff]
  %v745 = vld [vmem:[%s2 + $0x250] sm:$0xff]
  %v746 = vld [vmem:[%s2 + $0x258] sm:$0xff]
  %v747 = vld [vmem:[%s2 + $0x260] sm:$0xff]
  %v748 = vld [vmem:[%s2 + $0x268] sm:$0xff]
  %v749 = vld [vmem:[%s2 + $0x270] sm:$0xff]
  %v750 = vld [vmem:[%s2 + $0x278] sm:$0xff]
  %v751 = vld [vmem:[%s2 + $0x280] sm:$0xff]
  %v752 = vld [vmem:[%s2 + $0x288] sm:$0xff]
  %v753 = vld [vmem:[%s2 + $0x290] sm:$0xff]
  %v754 = vld [vmem:[%s2 + $0x298] sm:$0xff]
  %v755 = vld [vmem:[%s2 + $0x2a0] sm:$0xff]
  %v756 = vld [vmem:[%s2 + $0x2a8] sm:$0xff]
  %v757 = vld [vmem:[%s2 + $0x2b0] sm:$0xff]
  %v758 = vld [vmem:[%s2 + $0x2b8] sm:$0xff]
  %v759 = vld [vmem:[%s2 + $0x2c0] sm:$0xff]
  %v760 = vld [vmem:[%s2 + $0x2c8] sm:$0xff]
  %v761 = vld [vmem:[%s2 + $0x2d0] sm:$0xff]
  %v762 = vld [vmem:[%s2 + $0x2d8] sm:$0xff]
  %v763 = vld [vmem:[%s2 + $0x2e0] sm:$0xff]
  %v764 = vld [vmem:[%s2 + $0x2e8] sm:$0xff]
  %v765 = vld [vmem:[%s2 + $0x2f0] sm:$0xff]
  %v766 = vld [vmem:[%s2 + $0x2f8] sm:$0xff]
  %v767 = vld [vmem:[%s2 + $0x300] sm:$0xff]
  %v768 = vld [vmem:[%s2 + $0x308] sm:$0xff]
  %v769 = vld [vmem:[%s2 + $0x310] sm:$0xff]
  %v770 = vld [vmem:[%s2 + $0x318] sm:$0xff]
  %v771 = vld [vmem:[%s2 + $0x320] sm:$0xff]
  %v772 = vld [vmem:[%s2 + $0x328] sm:$0xff]
  %v773 = vld [vmem:[%s2 + $0x330] sm:$0xff]
  %v774 = vld [vmem:[%s2 + $0x338] sm:$0xff]
  %v775 = vld [vmem:[%s2 + $0x340] sm:$0xff]
  %v776 = vld [vmem:[%s2 + $0x348] sm:$0xff]
  %v777 = vld [vmem:[%s2 + $0x350] sm:$0xff]
  %v778 = vld [vmem:[%s2 + $0x358] sm:$0xff]
  %v779 = vld [vmem:[%s2 + $0x360] sm:$0xff]
  %v780 = vld [vmem:[%s2 + $0x368] sm:$0xff]
  %v781 = vld [vmem:[%s2 + $0x370] sm:$0xff]
  %v782 = vld [vmem:[%s2 + $0x378] sm:$0xff]
  %v783 = vld [vmem:[%s2 + $0x380] sm:$0xff]
  %v784 = vld [vmem:[%s2 + $0x388] sm:$0xff]
  %v785 = vld [vmem:[%s2 + $0x390] sm:$0xff]
  %v786 = vld [vmem:[%s2 + $0x398] sm:$0xff]
  %v787 = vld [vmem:[%s2 + $0x3a0] sm:$0xff]
  %v788 = vld [vmem:[%s2 + $0x3a8] sm:$0xff]
  %v789 = vld [vmem:[%s2 + $0x3b0] sm:$0xff]
  %v790 = vld [vmem:[%s2 + $0x3b8] sm:$0xff]
  %v791 = vld [vmem:[%s2 + $0x3c0] sm:$0xff]
  %v792 = vld [vmem:[%s2 + $0x3c8] sm:$0xff]
  %v793 = vld [vmem:[%s2 + $0x3d0] sm:$0xff]
  %v794 = vld [vmem:[%s2 + $0x3d8] sm:$0xff]
  %v795 = vld [vmem:[%s2 + $0x3e0] sm:$0xff]
  %v796 = vld [vmem:[%s2 + $0x3e8] sm:$0xff]
  %v797 = vld [vmem:[%s2 + $0x3f0] sm:$0xff]
  %v798 = vld [vmem:[%s2 + $0x3f8] sm:$0xff]
  %v799 = vld [vmem:[%s2 + $0x400] sm:$0xff]
  %v800 = vld [vmem:[%s2 + $0x408] sm:$0xff]
  %v801 = vld [vmem:[%s2 + $0x410] sm:$0xff]
  %v802 = vld [vmem:[%s2 + $0x418] sm:$0xff]
  %v803 = vld [vmem:[%s2 + $0x420] sm:$0xff]
  %v804 = vld [vmem:[%s2 + $0x428] sm:$0xff]
  %v805 = vld [vmem:[%s2 + $0x430] sm:$0xff]
  %v806 = vld [vmem:[%s2 + $0x438] sm:$0xff]
  %v807 = vld [vmem:[%s2 + $0x440] sm:$0xff]
  %v808 = vld [vmem:[%s2 + $0x448] sm:$0xff]
  %v809 = vld [vmem:[%s2 + $0x450] sm:$0xff]
  %v810 = vld [vmem:[%s2 + $0x458] sm:$0xff]
  %v811 = vld [vmem:[%s2 + $0x460] sm:$0xff]
  %v812 = vld [vmem:[%s2 + $0x468] sm:$0xff]
  %v813 = vld [vmem:[%s2 + $0x470] sm:$0xff]
  %v814 = vld [vmem:[%s2 + $0x478] sm:$0xff]
  %v815 = vld [vmem:[%s2 + $0x480] sm:$0xff]
  %v816 = vld [vmem:[%s2 + $0x488] sm:$0xff]
  %v817 = vld [vmem:[%s2 + $0x490] sm:$0xff]
  %v818 = vld [vmem:[%s2 + $0x498] sm:$0xff]
  %v819 = vld [vmem:[%s2 + $0x4a0] sm:$0xff]
  %v820 = vld [vmem:[%s2 + $0x4a8] sm:$0xff]
  %v821 = vld [vmem:[%s2 + $0x4b0] sm:$0xff]
  %v822 = vld [vmem:[%s2 + $0x4b8] sm:$0xff]
  %v823 = vld [vmem:[%s2 + $0x4c0] sm:$0xff]
  %v824 = vld [vmem:[%s2 + $0x4c8] sm:$0xff]
  %v825 = vld [vmem:[%s2 + $0x4d0] sm:$0xff]
  %v826 = vld [vmem:[%s2 + $0x4d8] sm:$0xff]
  %v827 = vld [vmem:[%s2 + $0x4e0] sm:$0xff]
  %v828 = vld [vmem:[%s2 + $0x4e8] sm:$0xff]
  %v829 = vld [vmem:[%s2 + $0x4f0] sm:$0xff]
  %v830 = vld [vmem:[%s2 + $0x4f8] sm:$0xff]
  %v831 = vld [vmem:[%s2 + $0x500] sm:$0xff]
  %v832 = vld [vmem:[%s2 + $0x508] sm:$0xff]
  %v833 = vld [vmem:[%s2 + $0x510] sm:$0xff]
  %v834 = vld [vmem:[%s2 + $0x518] sm:$0xff]
  %v835 = vld [vmem:[%s2 + $0x520] sm:$0xff]
  %v836 = vld [vmem:[%s2 + $0x528] sm:$0xff]
  %v837 = vld [vmem:[%s2 + $0x530] sm:$0xff]
  %v838 = vld [vmem:[%s2 + $0x538] sm:$0xff]
  %v839 = vld [vmem:[%s2 + $0x540] sm:$0xff]
  %v840 = vld [vmem:[%s2 + $0x548] sm:$0xff]
  %v841 = vld [vmem:[%s2 + $0x550] sm:$0xff]
  %v842 = vld [vmem:[%s2 + $0x558] sm:$0xff]
  %v843 = vld [vmem:[%s2 + $0x560] sm:$0xff]
  %v844 = vld [vmem:[%s2 + $0x568] sm:$0xff]
  %v845 = vld [vmem:[%s2 + $0x570] sm:$0xff]
  %v846 = vld [vmem:[%s2 + $0x578] sm:$0xff]
  %v847 = vld [vmem:[%s2 + $0x580] sm:$0xff]
  %v848 = vld [vmem:[%s2 + $0x588] sm:$0xff]
  %v849 = vld [vmem:[%s2 + $0x590] sm:$0xff]
  %v850 = vld [vmem:[%s2 + $0x598] sm:$0xff]
  %v851 = vld [vmem:[%s2 + $0x5a0] sm:$0xff]
  %v852 = vld [vmem:[%s2 + $0x5a8] sm:$0xff]
  %v853 = vld [vmem:[%s2 + $0x5b0] sm:$0xff]
  %v854 = vld [vmem:[%s2 + $0x5b8] sm:$0xff]
  %v855 = vld [vmem:[%s2 + $0x5c0] sm:$0xff]
  %v856 = vld [vmem:[%s2 + $0x5c8] sm:$0xff]
  %v857 = vld [vmem:[%s2 + $0x5d0] sm:$0xff]
  %v858 = vld [vmem:[%s2 + $0x5d8] sm:$0xff]
  %v859 = vld [vmem:[%s2 + $0x5e0] sm:$0xff]
  %v860 = vld [vmem:[%s2 + $0x5e8] sm:$0xff]
  %v861 = vld [vmem:[%s2 + $0x5f0] sm:$0xff]
  %v862 = vld [vmem:[%s2 + $0x5f8] sm:$0xff]
  %v863 = vld [vmem:[%s2 + $0x600] sm:$0xff]
  %v864 = vld [vmem:[%s2 + $0x608] sm:$0xff]
  %v865 = vld [vmem:[%s2 + $0x610] sm:$0xff]
  %v866 = vld [vmem:[%s2 + $0x618] sm:$0xff]
  %v867 = vld [vmem:[%s2 + $0x620] sm:$0xff]
  %v868 = vld [vmem:[%s2 + $0x628] sm:$0xff]
  %v869 = vld [vmem:[%s2 + $0x630] sm:$0xff]
  %v870 = vld [vmem:[%s2 + $0x638] sm:$0xff]
  %v871 = vld [vmem:[%s2 + $0x640] sm:$0xff]
  %v872 = vld [vmem:[%s2 + $0x648] sm:$0xff]
  %v873 = vld [vmem:[%s2 + $0x650] sm:$0xff]
  %v874 = vld [vmem:[%s2 + $0x658] sm:$0xff]
  %v875 = vld [vmem:[%s2 + $0x660] sm:$0xff]
  %v876 = vld [vmem:[%s2 + $0x668] sm:$0xff]
  %v877 = vld [vmem:[%s2 + $0x670] sm:$0xff]
  %v878 = vld [vmem:[%s2 + $0x678] sm:$0xff]
  %v879 = vld [vmem:[%s2 + $0x680] sm:$0xff]
  %v880 = vld [vmem:[%s2 + $0x688] sm:$0xff]
  %v881 = vld [vmem:[%s2 + $0x690] sm:$0xff]
  %v882 = vld [vmem:[%s2 + $0x698] sm:$0xff]
  %v883 = vld [vmem:[%s2 + $0x6a0] sm:$0xff]
  %v884 = vld [vmem:[%s2 + $0x6a8] sm:$0xff]
  %v885 = vld [vmem:[%s2 + $0x6b0] sm:$0xff]
  %v886 = vld [vmem:[%s2 + $0x6b8] sm:$0xff]
  %v887 = vld [vmem:[%s2 + $0x6c0] sm:$0xff]
  %v888 = vld [vmem:[%s2 + $0x6c8] sm:$0xff]
  %v889 = vld [vmem:[%s2 + $0x6d0] sm:$0xff]
  %v890 = vld [vmem:[%s2 + $0x6d8] sm:$0xff]
  %v891 = vld [vmem:[%s2 + $0x6e0] sm:$0xff]
  %v892 = vld [vmem:[%s2 + $0x6e8] sm:$0xff]
  %v893 = vld [vmem:[%s2 + $0x6f0] sm:$0xff]
  %v894 = vld [vmem:[%s2 + $0x6f8] sm:$0xff]
  %v895 = vld [vmem:[%s2 + $0x700] sm:$0xff]
  %v896 = vld [vmem:[%s2 + $0x708] sm:$0xff]
  %v897 = vld [vmem:[%s2 + $0x710] sm:$0xff]
  %v898 = vld [vmem:[%s2 + $0x718] sm:$0xff]
  %v899 = vld [vmem:[%s2 + $0x720] sm:$0xff]
  %v900 = vld [vmem:[%s2 + $0x728] sm:$0xff]
  %v901 = vld [vmem:[%s2 + $0x730] sm:$0xff]
  %v902 = vld [vmem:[%s2 + $0x738] sm:$0xff]
  %v903 = vld [vmem:[%s2 + $0x740] sm:$0xff]
  %v904 = vld [vmem:[%s2 + $0x748] sm:$0xff]
  %v905 = vld [vmem:[%s2 + $0x750] sm:$0xff]
  %v906 = vld [vmem:[%s2 + $0x758] sm:$0xff]
  %v907 = vld [vmem:[%s2 + $0x760] sm:$0xff]
  %v908 = vld [vmem:[%s2 + $0x768] sm:$0xff]
  %v909 = vld [vmem:[%s2 + $0x770] sm:$0xff]
  %v910 = vld [vmem:[%s2 + $0x778] sm:$0xff]
  %v911 = vld [vmem:[%s2 + $0x780] sm:$0xff]
  %v912 = vld [vmem:[%s2 + $0x788] sm:$0xff]
  %v913 = vld [vmem:[%s2 + $0x790] sm:$0xff]
  %v914 = vld [vmem:[%s2 + $0x798] sm:$0xff]
  %v915 = vld [vmem:[%s2 + $0x7a0] sm:$0xff]
  %v916 = vld [vmem:[%s2 + $0x7a8] sm:$0xff]
  %v917 = vld [vmem:[%s2 + $0x7b0] sm:$0xff]
  %v918 = vld [vmem:[%s2 + $0x7b8] sm:$0xff]
  %v919 = vld [vmem:[%s2 + $0x7c0] sm:$0xff]
  %v920 = vld [vmem:[%s2 + $0x7c8] sm:$0xff]
  %v921 = vld [vmem:[%s2 + $0x7d0] sm:$0xff]
  %v922 = vld [vmem:[%s2 + $0x7d8] sm:$0xff]
  %v923 = vld [vmem:[%s2 + $0x7e0] sm:$0xff]
  %v924 = vld [vmem:[%s2 + $0x7e8] sm:$0xff]
  %v925 = vld [vmem:[%s2 + $0x7f0] sm:$0xff]
  %v926 = vld [vmem:[%s2 + $0x7f8] sm:$0xff]
  %s927 = scalar_lea.vmem %s7, 1
  %v928 = vld [vmem:[%s927] ss:$8 sm:$0xf]
  %v930 = vlaneseq
  %v931 = vshrl.u32 %v930, 7
  %v932 = vsub.s32 0, %v931
  %v933 = vrot.slane %v928, %v932
  %v934 = vlaneseq
  %v935 = vshrl.u32 %v934, 7
  %v936 = vsub.s32 1, %v935
  %v937 = vrot.slane %v928, %v936
  %v938 = vlaneseq
  %v939 = vshrl.u32 %v938, 7
  %v940 = vsub.s32 2, %v939
  %v941 = vrot.slane %v928, %v940
  %v942 = vlaneseq
  %v943 = vshrl.u32 %v942, 7
  %v944 = vsub.s32 3, %v943
  %v945 = vrot.slane %v928, %v944
  %v1206 = vunpack.c.l.b16 %v671
  %v1207 = vunpack.c.h.b16 %v671
  %v1208 = vunpack.c.l.b16 %v672
  %v1209 = vunpack.c.h.b16 %v672
  %v1210 = vunpack.c.l.b16 %v673
  %v1211 = vunpack.c.h.b16 %v673
  %v1212 = vunpack.c.l.b16 %v674
  %v1213 = vunpack.c.h.b16 %v674
  %v1214 = vunpack.c.l.b16 %v675
  %v1215 = vunpack.c.h.b16 %v675
  %v1216 = vunpack.c.l.b16 %v676
  %v1217 = vunpack.c.h.b16 %v676
  %v1218 = vunpack.c.l.b16 %v677
  %v1219 = vunpack.c.h.b16 %v677
  %v1220 = vunpack.c.l.b16 %v678
  %v1221 = vunpack.c.h.b16 %v678
  %v1222 = vunpack.c.l.b16 %v679
  %v1223 = vunpack.c.h.b16 %v679
  %v1224 = vunpack.c.l.b16 %v680
  %v1225 = vunpack.c.h.b16 %v680
  %v1226 = vunpack.c.l.b16 %v681
  %v1227 = vunpack.c.h.b16 %v681
  %v1228 = vunpack.c.l.b16 %v682
  %v1229 = vunpack.c.h.b16 %v682
  %v1230 = vunpack.c.l.b16 %v683
  %v1231 = vunpack.c.h.b16 %v683
  %v1232 = vunpack.c.l.b16 %v684
  %v1233 = vunpack.c.h.b16 %v684
  %v1234 = vunpack.c.l.b16 %v685
  %v1235 = vunpack.c.h.b16 %v685
  %v1236 = vunpack.c.l.b16 %v686
  %v1237 = vunpack.c.h.b16 %v686
  %v1238 = vunpack.c.l.b16 %v687
  %v1239 = vunpack.c.h.b16 %v687
  %v1240 = vunpack.c.l.b16 %v688
  %v1241 = vunpack.c.h.b16 %v688
  %v1242 = vunpack.c.l.b16 %v689
  %v1243 = vunpack.c.h.b16 %v689
  %v1244 = vunpack.c.l.b16 %v690
  %v1245 = vunpack.c.h.b16 %v690
  %v1246 = vunpack.c.l.b16 %v691
  %v1247 = vunpack.c.h.b16 %v691
  %v1248 = vunpack.c.l.b16 %v692
  %v1249 = vunpack.c.h.b16 %v692
  %v1250 = vunpack.c.l.b16 %v693
  %v1251 = vunpack.c.h.b16 %v693
  %v1252 = vunpack.c.l.b16 %v694
  %v1253 = vunpack.c.h.b16 %v694
  %v1254 = vunpack.c.l.b16 %v695
  %v1255 = vunpack.c.h.b16 %v695
  %v1256 = vunpack.c.l.b16 %v696
  %v1257 = vunpack.c.h.b16 %v696
  %v1258 = vunpack.c.l.b16 %v697
  %v1259 = vunpack.c.h.b16 %v697
  %v1260 = vunpack.c.l.b16 %v698
  %v1261 = vunpack.c.h.b16 %v698
  %v1262 = vunpack.c.l.b16 %v699
  %v1263 = vunpack.c.h.b16 %v699
  %v1264 = vunpack.c.l.b16 %v700
  %v1265 = vunpack.c.h.b16 %v700
  %v1266 = vunpack.c.l.b16 %v701
  %v1267 = vunpack.c.h.b16 %v701
  %v1268 = vunpack.c.l.b16 %v702
  %v1269 = vunpack.c.h.b16 %v702
  %v1270 = vunpack.c.l.b16 %v703
  %v1271 = vunpack.c.h.b16 %v703
  %v1272 = vunpack.c.l.b16 %v704
  %v1273 = vunpack.c.h.b16 %v704
  %v1274 = vunpack.c.l.b16 %v705
  %v1275 = vunpack.c.h.b16 %v705
  %v1276 = vunpack.c.l.b16 %v706
  %v1277 = vunpack.c.h.b16 %v706
  %v1278 = vunpack.c.l.b16 %v707
  %v1279 = vunpack.c.h.b16 %v707
  %v1280 = vunpack.c.l.b16 %v708
  %v1281 = vunpack.c.h.b16 %v708
  %v1282 = vunpack.c.l.b16 %v709
  %v1283 = vunpack.c.h.b16 %v709
  %v1284 = vunpack.c.l.b16 %v710
  %v1285 = vunpack.c.h.b16 %v710
  %v1286 = vunpack.c.l.b16 %v711
  %v1287 = vunpack.c.h.b16 %v711
  %v1288 = vunpack.c.l.b16 %v712
  %v1289 = vunpack.c.h.b16 %v712
  %v1290 = vunpack.c.l.b16 %v713
  %v1291 = vunpack.c.h.b16 %v713
  %v1292 = vunpack.c.l.b16 %v714
  %v1293 = vunpack.c.h.b16 %v714
  %v1294 = vunpack.c.l.b16 %v715
  %v1295 = vunpack.c.h.b16 %v715
  %v1296 = vunpack.c.l.b16 %v716
  %v1297 = vunpack.c.h.b16 %v716
  %v1298 = vunpack.c.l.b16 %v717
  %v1299 = vunpack.c.h.b16 %v717
  %v1300 = vunpack.c.l.b16 %v718
  %v1301 = vunpack.c.h.b16 %v718
  %v1302 = vunpack.c.l.b16 %v719
  %v1303 = vunpack.c.h.b16 %v719
  %v1304 = vunpack.c.l.b16 %v720
  %v1305 = vunpack.c.h.b16 %v720
  %v1306 = vunpack.c.l.b16 %v721
  %v1307 = vunpack.c.h.b16 %v721
  %v1308 = vunpack.c.l.b16 %v722
  %v1309 = vunpack.c.h.b16 %v722
  %v1310 = vunpack.c.l.b16 %v723
  %v1311 = vunpack.c.h.b16 %v723
  %v1312 = vunpack.c.l.b16 %v724
  %v1313 = vunpack.c.h.b16 %v724
  %v1314 = vunpack.c.l.b16 %v725
  %v1315 = vunpack.c.h.b16 %v725
  %v1316 = vunpack.c.l.b16 %v726
  %v1317 = vunpack.c.h.b16 %v726
  %v1318 = vunpack.c.l.b16 %v727
  %v1319 = vunpack.c.h.b16 %v727
  %v1320 = vunpack.c.l.b16 %v728
  %v1321 = vunpack.c.h.b16 %v728
  %v1322 = vunpack.c.l.b16 %v729
  %v1323 = vunpack.c.h.b16 %v729
  %v1324 = vunpack.c.l.b16 %v730
  %v1325 = vunpack.c.h.b16 %v730
  %v1326 = vunpack.c.l.b16 %v731
  %v1327 = vunpack.c.h.b16 %v731
  %v1328 = vunpack.c.l.b16 %v732
  %v1329 = vunpack.c.h.b16 %v732
  %v1330 = vunpack.c.l.b16 %v733
  %v1331 = vunpack.c.h.b16 %v733
  %v1332 = vunpack.c.l.b16 %v734
  %v1333 = vunpack.c.h.b16 %v734
  %v1334 = vunpack.c.l.b16 %v735
  %v1335 = vunpack.c.h.b16 %v735
  %v1336 = vunpack.c.l.b16 %v736
  %v1337 = vunpack.c.h.b16 %v736
  %v1338 = vunpack.c.l.b16 %v737
  %v1339 = vunpack.c.h.b16 %v737
  %v1340 = vunpack.c.l.b16 %v738
  %v1341 = vunpack.c.h.b16 %v738
  %v1342 = vunpack.c.l.b16 %v739
  %v1343 = vunpack.c.h.b16 %v739
  %v1344 = vunpack.c.l.b16 %v740
  %v1345 = vunpack.c.h.b16 %v740
  %v1346 = vunpack.c.l.b16 %v741
  %v1347 = vunpack.c.h.b16 %v741
  %v1348 = vunpack.c.l.b16 %v742
  %v1349 = vunpack.c.h.b16 %v742
  %v1350 = vunpack.c.l.b16 %v743
  %v1351 = vunpack.c.h.b16 %v743
  %v1352 = vunpack.c.l.b16 %v744
  %v1353 = vunpack.c.h.b16 %v744
  %v1354 = vunpack.c.l.b16 %v745
  %v1355 = vunpack.c.h.b16 %v745
  %v1356 = vunpack.c.l.b16 %v746
  %v1357 = vunpack.c.h.b16 %v746
  %v1358 = vunpack.c.l.b16 %v747
  %v1359 = vunpack.c.h.b16 %v747
  %v1360 = vunpack.c.l.b16 %v748
  %v1361 = vunpack.c.h.b16 %v748
  %v1362 = vunpack.c.l.b16 %v749
  %v1363 = vunpack.c.h.b16 %v749
  %v1364 = vunpack.c.l.b16 %v750
  %v1365 = vunpack.c.h.b16 %v750
  %v1366 = vunpack.c.l.b16 %v751
  %v1367 = vunpack.c.h.b16 %v751
  %v1368 = vunpack.c.l.b16 %v752
  %v1369 = vunpack.c.h.b16 %v752
  %v1370 = vunpack.c.l.b16 %v753
  %v1371 = vunpack.c.h.b16 %v753
  %v1372 = vunpack.c.l.b16 %v754
  %v1373 = vunpack.c.h.b16 %v754
  %v1374 = vunpack.c.l.b16 %v755
  %v1375 = vunpack.c.h.b16 %v755
  %v1376 = vunpack.c.l.b16 %v756
  %v1377 = vunpack.c.h.b16 %v756
  %v1378 = vunpack.c.l.b16 %v757
  %v1379 = vunpack.c.h.b16 %v757
  %v1380 = vunpack.c.l.b16 %v758
  %v1381 = vunpack.c.h.b16 %v758
  %v1382 = vunpack.c.l.b16 %v759
  %v1383 = vunpack.c.h.b16 %v759
  %v1384 = vunpack.c.l.b16 %v760
  %v1385 = vunpack.c.h.b16 %v760
  %v1386 = vunpack.c.l.b16 %v761
  %v1387 = vunpack.c.h.b16 %v761
  %v1388 = vunpack.c.l.b16 %v762
  %v1389 = vunpack.c.h.b16 %v762
  %v1390 = vunpack.c.l.b16 %v763
  %v1391 = vunpack.c.h.b16 %v763
  %v1392 = vunpack.c.l.b16 %v764
  %v1393 = vunpack.c.h.b16 %v764
  %v1394 = vunpack.c.l.b16 %v765
  %v1395 = vunpack.c.h.b16 %v765
  %v1396 = vunpack.c.l.b16 %v766
  %v1397 = vunpack.c.h.b16 %v766
  %v1398 = vunpack.c.l.b16 %v767
  %v1399 = vunpack.c.h.b16 %v767
  %v1400 = vunpack.c.l.b16 %v768
  %v1401 = vunpack.c.h.b16 %v768
  %v1402 = vunpack.c.l.b16 %v769
  %v1403 = vunpack.c.h.b16 %v769
  %v1404 = vunpack.c.l.b16 %v770
  %v1405 = vunpack.c.h.b16 %v770
  %v1406 = vunpack.c.l.b16 %v771
  %v1407 = vunpack.c.h.b16 %v771
  %v1408 = vunpack.c.l.b16 %v772
  %v1409 = vunpack.c.h.b16 %v772
  %v1410 = vunpack.c.l.b16 %v773
  %v1411 = vunpack.c.h.b16 %v773
  %v1412 = vunpack.c.l.b16 %v774
  %v1413 = vunpack.c.h.b16 %v774
  %v1414 = vunpack.c.l.b16 %v775
  %v1415 = vunpack.c.h.b16 %v775
  %v1416 = vunpack.c.l.b16 %v776
  %v1417 = vunpack.c.h.b16 %v776
  %v1418 = vunpack.c.l.b16 %v777
  %v1419 = vunpack.c.h.b16 %v777
  %v1420 = vunpack.c.l.b16 %v778
  %v1421 = vunpack.c.h.b16 %v778
  %v1422 = vunpack.c.l.b16 %v779
  %v1423 = vunpack.c.h.b16 %v779
  %v1424 = vunpack.c.l.b16 %v780
  %v1425 = vunpack.c.h.b16 %v780
  %v1426 = vunpack.c.l.b16 %v781
  %v1427 = vunpack.c.h.b16 %v781
  %v1428 = vunpack.c.l.b16 %v782
  %v1429 = vunpack.c.h.b16 %v782
  %v1430 = vunpack.c.l.b16 %v783
  %v1431 = vunpack.c.h.b16 %v783
  %v1432 = vunpack.c.l.b16 %v784
  %v1433 = vunpack.c.h.b16 %v784
  %v1434 = vunpack.c.l.b16 %v785
  %v1435 = vunpack.c.h.b16 %v785
  %v1436 = vunpack.c.l.b16 %v786
  %v1437 = vunpack.c.h.b16 %v786
  %v1438 = vunpack.c.l.b16 %v787
  %v1439 = vunpack.c.h.b16 %v787
  %v1440 = vunpack.c.l.b16 %v788
  %v1441 = vunpack.c.h.b16 %v788
  %v1442 = vunpack.c.l.b16 %v789
  %v1443 = vunpack.c.h.b16 %v789
  %v1444 = vunpack.c.l.b16 %v790
  %v1445 = vunpack.c.h.b16 %v790
  %v1446 = vunpack.c.l.b16 %v791
  %v1447 = vunpack.c.h.b16 %v791
  %v1448 = vunpack.c.l.b16 %v792
  %v1449 = vunpack.c.h.b16 %v792
  %v1450 = vunpack.c.l.b16 %v793
  %v1451 = vunpack.c.h.b16 %v793
  %v1452 = vunpack.c.l.b16 %v794
  %v1453 = vunpack.c.h.b16 %v794
  %v1454 = vunpack.c.l.b16 %v795
  %v1455 = vunpack.c.h.b16 %v795
  %v1456 = vunpack.c.l.b16 %v796
  %v1457 = vunpack.c.h.b16 %v796
  %v1458 = vunpack.c.l.b16 %v797
  %v1459 = vunpack.c.h.b16 %v797
  %v1460 = vunpack.c.l.b16 %v798
  %v1461 = vunpack.c.h.b16 %v798
  %v1462 = vunpack.c.l.b16 %v799
  %v1463 = vunpack.c.h.b16 %v799
  %v1464 = vunpack.c.l.b16 %v800
  %v1465 = vunpack.c.h.b16 %v800
  %v1466 = vunpack.c.l.b16 %v801
  %v1467 = vunpack.c.h.b16 %v801
  %v1468 = vunpack.c.l.b16 %v802
  %v1469 = vunpack.c.h.b16 %v802
  %v1470 = vunpack.c.l.b16 %v803
  %v1471 = vunpack.c.h.b16 %v803
  %v1472 = vunpack.c.l.b16 %v804
  %v1473 = vunpack.c.h.b16 %v804
  %v1474 = vunpack.c.l.b16 %v805
  %v1475 = vunpack.c.h.b16 %v805
  %v1476 = vunpack.c.l.b16 %v806
  %v1477 = vunpack.c.h.b16 %v806
  %v1478 = vunpack.c.l.b16 %v807
  %v1479 = vunpack.c.h.b16 %v807
  %v1480 = vunpack.c.l.b16 %v808
  %v1481 = vunpack.c.h.b16 %v808
  %v1482 = vunpack.c.l.b16 %v809
  %v1483 = vunpack.c.h.b16 %v809
  %v1484 = vunpack.c.l.b16 %v810
  %v1485 = vunpack.c.h.b16 %v810
  %v1486 = vunpack.c.l.b16 %v811
  %v1487 = vunpack.c.h.b16 %v811
  %v1488 = vunpack.c.l.b16 %v812
  %v1489 = vunpack.c.h.b16 %v812
  %v1490 = vunpack.c.l.b16 %v813
  %v1491 = vunpack.c.h.b16 %v813
  %v1492 = vunpack.c.l.b16 %v814
  %v1493 = vunpack.c.h.b16 %v814
  %v1494 = vunpack.c.l.b16 %v815
  %v1495 = vunpack.c.h.b16 %v815
  %v1496 = vunpack.c.l.b16 %v816
  %v1497 = vunpack.c.h.b16 %v816
  %v1498 = vunpack.c.l.b16 %v817
  %v1499 = vunpack.c.h.b16 %v817
  %v1500 = vunpack.c.l.b16 %v818
  %v1501 = vunpack.c.h.b16 %v818
  %v1502 = vunpack.c.l.b16 %v819
  %v1503 = vunpack.c.h.b16 %v819
  %v1504 = vunpack.c.l.b16 %v820
  %v1505 = vunpack.c.h.b16 %v820
  %v1506 = vunpack.c.l.b16 %v821
  %v1507 = vunpack.c.h.b16 %v821
  %v1508 = vunpack.c.l.b16 %v822
  %v1509 = vunpack.c.h.b16 %v822
  %v1510 = vunpack.c.l.b16 %v823
  %v1511 = vunpack.c.h.b16 %v823
  %v1512 = vunpack.c.l.b16 %v824
  %v1513 = vunpack.c.h.b16 %v824
  %v1514 = vunpack.c.l.b16 %v825
  %v1515 = vunpack.c.h.b16 %v825
  %v1516 = vunpack.c.l.b16 %v826
  %v1517 = vunpack.c.h.b16 %v826
  %v1518 = vunpack.c.l.b16 %v827
  %v1519 = vunpack.c.h.b16 %v827
  %v1520 = vunpack.c.l.b16 %v828
  %v1521 = vunpack.c.h.b16 %v828
  %v1522 = vunpack.c.l.b16 %v829
  %v1523 = vunpack.c.h.b16 %v829
  %v1524 = vunpack.c.l.b16 %v830
  %v1525 = vunpack.c.h.b16 %v830
  %v1526 = vunpack.c.l.b16 %v831
  %v1527 = vunpack.c.h.b16 %v831
  %v1528 = vunpack.c.l.b16 %v832
  %v1529 = vunpack.c.h.b16 %v832
  %v1530 = vunpack.c.l.b16 %v833
  %v1531 = vunpack.c.h.b16 %v833
  %v1532 = vunpack.c.l.b16 %v834
  %v1533 = vunpack.c.h.b16 %v834
  %v1534 = vunpack.c.l.b16 %v835
  %v1535 = vunpack.c.h.b16 %v835
  %v1536 = vunpack.c.l.b16 %v836
  %v1537 = vunpack.c.h.b16 %v836
  %v1538 = vunpack.c.l.b16 %v837
  %v1539 = vunpack.c.h.b16 %v837
  %v1540 = vunpack.c.l.b16 %v838
  %v1541 = vunpack.c.h.b16 %v838
  %v1542 = vunpack.c.l.b16 %v839
  %v1543 = vunpack.c.h.b16 %v839
  %v1544 = vunpack.c.l.b16 %v840
  %v1545 = vunpack.c.h.b16 %v840
  %v1546 = vunpack.c.l.b16 %v841
  %v1547 = vunpack.c.h.b16 %v841
  %v1548 = vunpack.c.l.b16 %v842
  %v1549 = vunpack.c.h.b16 %v842
  %v1550 = vunpack.c.l.b16 %v843
  %v1551 = vunpack.c.h.b16 %v843
  %v1552 = vunpack.c.l.b16 %v844
  %v1553 = vunpack.c.h.b16 %v844
  %v1554 = vunpack.c.l.b16 %v845
  %v1555 = vunpack.c.h.b16 %v845
  %v1556 = vunpack.c.l.b16 %v846
  %v1557 = vunpack.c.h.b16 %v846
  %v1558 = vunpack.c.l.b16 %v847
  %v1559 = vunpack.c.h.b16 %v847
  %v1560 = vunpack.c.l.b16 %v848
  %v1561 = vunpack.c.h.b16 %v848
  %v1562 = vunpack.c.l.b16 %v849
  %v1563 = vunpack.c.h.b16 %v849
  %v1564 = vunpack.c.l.b16 %v850
  %v1565 = vunpack.c.h.b16 %v850
  %v1566 = vunpack.c.l.b16 %v851
  %v1567 = vunpack.c.h.b16 %v851
  %v1568 = vunpack.c.l.b16 %v852
  %v1569 = vunpack.c.h.b16 %v852
  %v1570 = vunpack.c.l.b16 %v853
  %v1571 = vunpack.c.h.b16 %v853
  %v1572 = vunpack.c.l.b16 %v854
  %v1573 = vunpack.c.h.b16 %v854
  %v1574 = vunpack.c.l.b16 %v855
  %v1575 = vunpack.c.h.b16 %v855
  %v1576 = vunpack.c.l.b16 %v856
  %v1577 = vunpack.c.h.b16 %v856
  %v1578 = vunpack.c.l.b16 %v857
  %v1579 = vunpack.c.h.b16 %v857
  %v1580 = vunpack.c.l.b16 %v858
  %v1581 = vunpack.c.h.b16 %v858
  %v1582 = vunpack.c.l.b16 %v859
  %v1583 = vunpack.c.h.b16 %v859
  %v1584 = vunpack.c.l.b16 %v860
  %v1585 = vunpack.c.h.b16 %v860
  %v1586 = vunpack.c.l.b16 %v861
  %v1587 = vunpack.c.h.b16 %v861
  %v1588 = vunpack.c.l.b16 %v862
  %v1589 = vunpack.c.h.b16 %v862
  %v1590 = vunpack.c.l.b16 %v863
  %v1591 = vunpack.c.h.b16 %v863
  %v1592 = vunpack.c.l.b16 %v864
  %v1593 = vunpack.c.h.b16 %v864
  %v1594 = vunpack.c.l.b16 %v865
  %v1595 = vunpack.c.h.b16 %v865
  %v1596 = vunpack.c.l.b16 %v866
  %v1597 = vunpack.c.h.b16 %v866
  %v1598 = vunpack.c.l.b16 %v867
  %v1599 = vunpack.c.h.b16 %v867
  %v1600 = vunpack.c.l.b16 %v868
  %v1601 = vunpack.c.h.b16 %v868
  %v1602 = vunpack.c.l.b16 %v869
  %v1603 = vunpack.c.h.b16 %v869
  %v1604 = vunpack.c.l.b16 %v870
  %v1605 = vunpack.c.h.b16 %v870
  %v1606 = vunpack.c.l.b16 %v871
  %v1607 = vunpack.c.h.b16 %v871
  %v1608 = vunpack.c.l.b16 %v872
  %v1609 = vunpack.c.h.b16 %v872
  %v1610 = vunpack.c.l.b16 %v873
  %v1611 = vunpack.c.h.b16 %v873
  %v1612 = vunpack.c.l.b16 %v874
  %v1613 = vunpack.c.h.b16 %v874
  %v1614 = vunpack.c.l.b16 %v875
  %v1615 = vunpack.c.h.b16 %v875
  %v1616 = vunpack.c.l.b16 %v876
  %v1617 = vunpack.c.h.b16 %v876
  %v1618 = vunpack.c.l.b16 %v877
  %v1619 = vunpack.c.h.b16 %v877
  %v1620 = vunpack.c.l.b16 %v878
  %v1621 = vunpack.c.h.b16 %v878
  %v1622 = vunpack.c.l.b16 %v879
  %v1623 = vunpack.c.h.b16 %v879
  %v1624 = vunpack.c.l.b16 %v880
  %v1625 = vunpack.c.h.b16 %v880
  %v1626 = vunpack.c.l.b16 %v881
  %v1627 = vunpack.c.h.b16 %v881
  %v1628 = vunpack.c.l.b16 %v882
  %v1629 = vunpack.c.h.b16 %v882
  %v1630 = vunpack.c.l.b16 %v883
  %v1631 = vunpack.c.h.b16 %v883
  %v1632 = vunpack.c.l.b16 %v884
  %v1633 = vunpack.c.h.b16 %v884
  %v1634 = vunpack.c.l.b16 %v885
  %v1635 = vunpack.c.h.b16 %v885
  %v1636 = vunpack.c.l.b16 %v886
  %v1637 = vunpack.c.h.b16 %v886
  %v1638 = vunpack.c.l.b16 %v887
  %v1639 = vunpack.c.h.b16 %v887
  %v1640 = vunpack.c.l.b16 %v888
  %v1641 = vunpack.c.h.b16 %v888
  %v1642 = vunpack.c.l.b16 %v889
  %v1643 = vunpack.c.h.b16 %v889
  %v1644 = vunpack.c.l.b16 %v890
  %v1645 = vunpack.c.h.b16 %v890
  %v1646 = vunpack.c.l.b16 %v891
  %v1647 = vunpack.c.h.b16 %v891
  %v1648 = vunpack.c.l.b16 %v892
  %v1649 = vunpack.c.h.b16 %v892
  %v1650 = vunpack.c.l.b16 %v893
  %v1651 = vunpack.c.h.b16 %v893
  %v1652 = vunpack.c.l.b16 %v894
  %v1653 = vunpack.c.h.b16 %v894
  %v1654 = vunpack.c.l.b16 %v895
  %v1655 = vunpack.c.h.b16 %v895
  %v1656 = vunpack.c.l.b16 %v896
  %v1657 = vunpack.c.h.b16 %v896
  %v1658 = vunpack.c.l.b16 %v897
  %v1659 = vunpack.c.h.b16 %v897
  %v1660 = vunpack.c.l.b16 %v898
  %v1661 = vunpack.c.h.b16 %v898
  %v1662 = vunpack.c.l.b16 %v899
  %v1663 = vunpack.c.h.b16 %v899
  %v1664 = vunpack.c.l.b16 %v900
  %v1665 = vunpack.c.h.b16 %v900
  %v1666 = vunpack.c.l.b16 %v901
  %v1667 = vunpack.c.h.b16 %v901
  %v1668 = vunpack.c.l.b16 %v902
  %v1669 = vunpack.c.h.b16 %v902
  %v1670 = vunpack.c.l.b16 %v903
  %v1671 = vunpack.c.h.b16 %v903
  %v1672 = vunpack.c.l.b16 %v904
  %v1673 = vunpack.c.h.b16 %v904
  %v1674 = vunpack.c.l.b16 %v905
  %v1675 = vunpack.c.h.b16 %v905
  %v1676 = vunpack.c.l.b16 %v906
  %v1677 = vunpack.c.h.b16 %v906
  %v1678 = vunpack.c.l.b16 %v907
  %v1679 = vunpack.c.h.b16 %v907
  %v1680 = vunpack.c.l.b16 %v908
  %v1681 = vunpack.c.h.b16 %v908
  %v1682 = vunpack.c.l.b16 %v909
  %v1683 = vunpack.c.h.b16 %v909
  %v1684 = vunpack.c.l.b16 %v910
  %v1685 = vunpack.c.h.b16 %v910
  %v1686 = vunpack.c.l.b16 %v911
  %v1687 = vunpack.c.h.b16 %v911
  %v1688 = vunpack.c.l.b16 %v912
  %v1689 = vunpack.c.h.b16 %v912
  %v1690 = vunpack.c.l.b16 %v913
  %v1691 = vunpack.c.h.b16 %v913
  %v1692 = vunpack.c.l.b16 %v914
  %v1693 = vunpack.c.h.b16 %v914
  %v1694 = vunpack.c.l.b16 %v915
  %v1695 = vunpack.c.h.b16 %v915
  %v1696 = vunpack.c.l.b16 %v916
  %v1697 = vunpack.c.h.b16 %v916
  %v1698 = vunpack.c.l.b16 %v917
  %v1699 = vunpack.c.h.b16 %v917
  %v1700 = vunpack.c.l.b16 %v918
  %v1701 = vunpack.c.h.b16 %v918
  %v1702 = vunpack.c.l.b16 %v919
  %v1703 = vunpack.c.h.b16 %v919
  %v1704 = vunpack.c.l.b16 %v920
  %v1705 = vunpack.c.h.b16 %v920
  %v1706 = vunpack.c.l.b16 %v921
  %v1707 = vunpack.c.h.b16 %v921
  %v1708 = vunpack.c.l.b16 %v922
  %v1709 = vunpack.c.h.b16 %v922
  %v1710 = vunpack.c.l.b16 %v923
  %v1711 = vunpack.c.h.b16 %v923
  %v1712 = vunpack.c.l.b16 %v924
  %v1713 = vunpack.c.h.b16 %v924
  %v1714 = vunpack.c.l.b16 %v925
  %v1715 = vunpack.c.h.b16 %v925
  %v1716 = vunpack.c.l.b16 %v926
  %v1717 = vunpack.c.h.b16 %v926
  %v1718 = vpack.c.b16 %v1210, %v1206
  %v1719 = vpack.c.b16 %v1211, %v1207
  %v1720 = vpack.c.b16 %v1212, %v1208
  %v1721 = vpack.c.b16 %v1213, %v1209
  %v1722 = vpack.c.b16 %v1218, %v1214
  %v1723 = vpack.c.b16 %v1219, %v1215
  %v1724 = vpack.c.b16 %v1220, %v1216
  %v1725 = vpack.c.b16 %v1221, %v1217
  %v1726 = vpack.c.b16 %v1226, %v1222
  %v1727 = vpack.c.b16 %v1227, %v1223
  %v1728 = vpack.c.b16 %v1228, %v1224
  %v1729 = vpack.c.b16 %v1229, %v1225
  %v1730 = vpack.c.b16 %v1234, %v1230
  %v1731 = vpack.c.b16 %v1235, %v1231
  %v1732 = vpack.c.b16 %v1236, %v1232
  %v1733 = vpack.c.b16 %v1237, %v1233
  %v1734 = vpack.c.b16 %v1242, %v1238
  %v1735 = vpack.c.b16 %v1243, %v1239
  %v1736 = vpack.c.b16 %v1244, %v1240
  %v1737 = vpack.c.b16 %v1245, %v1241
  %v1738 = vpack.c.b16 %v1250, %v1246
  %v1739 = vpack.c.b16 %v1251, %v1247
  %v1740 = vpack.c.b16 %v1252, %v1248
  %v1741 = vpack.c.b16 %v1253, %v1249
  %v1742 = vpack.c.b16 %v1258, %v1254
  %v1743 = vpack.c.b16 %v1259, %v1255
  %v1744 = vpack.c.b16 %v1260, %v1256
  %v1745 = vpack.c.b16 %v1261, %v1257
  %v1746 = vpack.c.b16 %v1266, %v1262
  %v1747 = vpack.c.b16 %v1267, %v1263
  %v1748 = vpack.c.b16 %v1268, %v1264
  %v1749 = vpack.c.b16 %v1269, %v1265
  %v1750 = vpack.c.b16 %v1274, %v1270
  %v1751 = vpack.c.b16 %v1275, %v1271
  %v1752 = vpack.c.b16 %v1276, %v1272
  %v1753 = vpack.c.b16 %v1277, %v1273
  %v1754 = vpack.c.b16 %v1282, %v1278
  %v1755 = vpack.c.b16 %v1283, %v1279
  %v1756 = vpack.c.b16 %v1284, %v1280
  %v1757 = vpack.c.b16 %v1285, %v1281
  %v1758 = vpack.c.b16 %v1290, %v1286
  %v1759 = vpack.c.b16 %v1291, %v1287
  %v1760 = vpack.c.b16 %v1292, %v1288
  %v1761 = vpack.c.b16 %v1293, %v1289
  %v1762 = vpack.c.b16 %v1298, %v1294
  %v1763 = vpack.c.b16 %v1299, %v1295
  %v1764 = vpack.c.b16 %v1300, %v1296
  %v1765 = vpack.c.b16 %v1301, %v1297
  %v1766 = vpack.c.b16 %v1306, %v1302
  %v1767 = vpack.c.b16 %v1307, %v1303
  %v1768 = vpack.c.b16 %v1308, %v1304
  %v1769 = vpack.c.b16 %v1309, %v1305
  %v1770 = vpack.c.b16 %v1314, %v1310
  %v1771 = vpack.c.b16 %v1315, %v1311
  %v1772 = vpack.c.b16 %v1316, %v1312
  %v1773 = vpack.c.b16 %v1317, %v1313
  %v1774 = vpack.c.b16 %v1322, %v1318
  %v1775 = vpack.c.b16 %v1323, %v1319
  %v1776 = vpack.c.b16 %v1324, %v1320
  %v1777 = vpack.c.b16 %v1325, %v1321
  %v1778 = vpack.c.b16 %v1330, %v1326
  %v1779 = vpack.c.b16 %v1331, %v1327
  %v1780 = vpack.c.b16 %v1332, %v1328
  %v1781 = vpack.c.b16 %v1333, %v1329
  %v1782 = vpack.c.b16 %v1338, %v1334
  %v1783 = vpack.c.b16 %v1339, %v1335
  %v1784 = vpack.c.b16 %v1340, %v1336
  %v1785 = vpack.c.b16 %v1341, %v1337
  %v1786 = vpack.c.b16 %v1346, %v1342
  %v1787 = vpack.c.b16 %v1347, %v1343
  %v1788 = vpack.c.b16 %v1348, %v1344
  %v1789 = vpack.c.b16 %v1349, %v1345
  %v1790 = vpack.c.b16 %v1354, %v1350
  %v1791 = vpack.c.b16 %v1355, %v1351
  %v1792 = vpack.c.b16 %v1356, %v1352
  %v1793 = vpack.c.b16 %v1357, %v1353
  %v1794 = vpack.c.b16 %v1362, %v1358
  %v1795 = vpack.c.b16 %v1363, %v1359
  %v1796 = vpack.c.b16 %v1364, %v1360
  %v1797 = vpack.c.b16 %v1365, %v1361
  %v1798 = vpack.c.b16 %v1370, %v1366
  %v1799 = vpack.c.b16 %v1371, %v1367
  %v1800 = vpack.c.b16 %v1372, %v1368
  %v1801 = vpack.c.b16 %v1373, %v1369
  %v1802 = vpack.c.b16 %v1378, %v1374
  %v1803 = vpack.c.b16 %v1379, %v1375
  %v1804 = vpack.c.b16 %v1380, %v1376
  %v1805 = vpack.c.b16 %v1381, %v1377
  %v1806 = vpack.c.b16 %v1386, %v1382
  %v1807 = vpack.c.b16 %v1387, %v1383
  %v1808 = vpack.c.b16 %v1388, %v1384
  %v1809 = vpack.c.b16 %v1389, %v1385
  %v1810 = vpack.c.b16 %v1394, %v1390
  %v1811 = vpack.c.b16 %v1395, %v1391
  %v1812 = vpack.c.b16 %v1396, %v1392
  %v1813 = vpack.c.b16 %v1397, %v1393
  %v1814 = vpack.c.b16 %v1402, %v1398
  %v1815 = vpack.c.b16 %v1403, %v1399
  %v1816 = vpack.c.b16 %v1404, %v1400
  %v1817 = vpack.c.b16 %v1405, %v1401
  %v1818 = vpack.c.b16 %v1410, %v1406
  %v1819 = vpack.c.b16 %v1411, %v1407
  %v1820 = vpack.c.b16 %v1412, %v1408
  %v1821 = vpack.c.b16 %v1413, %v1409
  %v1822 = vpack.c.b16 %v1418, %v1414
  %v1823 = vpack.c.b16 %v1419, %v1415
  %v1824 = vpack.c.b16 %v1420, %v1416
  %v1825 = vpack.c.b16 %v1421, %v1417
  %v1826 = vpack.c.b16 %v1426, %v1422
  %v1827 = vpack.c.b16 %v1427, %v1423
  %v1828 = vpack.c.b16 %v1428, %v1424
  %v1829 = vpack.c.b16 %v1429, %v1425
  %v1830 = vpack.c.b16 %v1434, %v1430
  %v1831 = vpack.c.b16 %v1435, %v1431
  %v1832 = vpack.c.b16 %v1436, %v1432
  %v1833 = vpack.c.b16 %v1437, %v1433
  %v1834 = vpack.c.b16 %v1442, %v1438
  %v1835 = vpack.c.b16 %v1443, %v1439
  %v1836 = vpack.c.b16 %v1444, %v1440
  %v1837 = vpack.c.b16 %v1445, %v1441
  %v1838 = vpack.c.b16 %v1450, %v1446
  %v1839 = vpack.c.b16 %v1451, %v1447
  %v1840 = vpack.c.b16 %v1452, %v1448
  %v1841 = vpack.c.b16 %v1453, %v1449
  %v1842 = vpack.c.b16 %v1458, %v1454
  %v1843 = vpack.c.b16 %v1459, %v1455
  %v1844 = vpack.c.b16 %v1460, %v1456
  %v1845 = vpack.c.b16 %v1461, %v1457
  %v1846 = vpack.c.b16 %v1466, %v1462
  %v1847 = vpack.c.b16 %v1467, %v1463
  %v1848 = vpack.c.b16 %v1468, %v1464
  %v1849 = vpack.c.b16 %v1469, %v1465
  %v1850 = vpack.c.b16 %v1474, %v1470
  %v1851 = vpack.c.b16 %v1475, %v1471
  %v1852 = vpack.c.b16 %v1476, %v1472
  %v1853 = vpack.c.b16 %v1477, %v1473
  %v1854 = vpack.c.b16 %v1482, %v1478
  %v1855 = vpack.c.b16 %v1483, %v1479
  %v1856 = vpack.c.b16 %v1484, %v1480
  %v1857 = vpack.c.b16 %v1485, %v1481
  %v1858 = vpack.c.b16 %v1490, %v1486
  %v1859 = vpack.c.b16 %v1491, %v1487
  %v1860 = vpack.c.b16 %v1492, %v1488
  %v1861 = vpack.c.b16 %v1493, %v1489
  %v1862 = vpack.c.b16 %v1498, %v1494
  %v1863 = vpack.c.b16 %v1499, %v1495
  %v1864 = vpack.c.b16 %v1500, %v1496
  %v1865 = vpack.c.b16 %v1501, %v1497
  %v1866 = vpack.c.b16 %v1506, %v1502
  %v1867 = vpack.c.b16 %v1507, %v1503
  %v1868 = vpack.c.b16 %v1508, %v1504
  %v1869 = vpack.c.b16 %v1509, %v1505
  %v1870 = vpack.c.b16 %v1514, %v1510
  %v1871 = vpack.c.b16 %v1515, %v1511
  %v1872 = vpack.c.b16 %v1516, %v1512
  %v1873 = vpack.c.b16 %v1517, %v1513
  %v1874 = vpack.c.b16 %v1522, %v1518
  %v1875 = vpack.c.b16 %v1523, %v1519
  %v1876 = vpack.c.b16 %v1524, %v1520
  %v1877 = vpack.c.b16 %v1525, %v1521
  %v1878 = vpack.c.b16 %v1530, %v1526
  %v1879 = vpack.c.b16 %v1531, %v1527
  %v1880 = vpack.c.b16 %v1532, %v1528
  %v1881 = vpack.c.b16 %v1533, %v1529
  %v1882 = vpack.c.b16 %v1538, %v1534
  %v1883 = vpack.c.b16 %v1539, %v1535
  %v1884 = vpack.c.b16 %v1540, %v1536
  %v1885 = vpack.c.b16 %v1541, %v1537
  %v1886 = vpack.c.b16 %v1546, %v1542
  %v1887 = vpack.c.b16 %v1547, %v1543
  %v1888 = vpack.c.b16 %v1548, %v1544
  %v1889 = vpack.c.b16 %v1549, %v1545
  %v1890 = vpack.c.b16 %v1554, %v1550
  %v1891 = vpack.c.b16 %v1555, %v1551
  %v1892 = vpack.c.b16 %v1556, %v1552
  %v1893 = vpack.c.b16 %v1557, %v1553
  %v1894 = vpack.c.b16 %v1562, %v1558
  %v1895 = vpack.c.b16 %v1563, %v1559
  %v1896 = vpack.c.b16 %v1564, %v1560
  %v1897 = vpack.c.b16 %v1565, %v1561
  %v1898 = vpack.c.b16 %v1570, %v1566
  %v1899 = vpack.c.b16 %v1571, %v1567
  %v1900 = vpack.c.b16 %v1572, %v1568
  %v1901 = vpack.c.b16 %v1573, %v1569
  %v1902 = vpack.c.b16 %v1578, %v1574
  %v1903 = vpack.c.b16 %v1579, %v1575
  %v1904 = vpack.c.b16 %v1580, %v1576
  %v1905 = vpack.c.b16 %v1581, %v1577
  %v1906 = vpack.c.b16 %v1586, %v1582
  %v1907 = vpack.c.b16 %v1587, %v1583
  %v1908 = vpack.c.b16 %v1588, %v1584
  %v1909 = vpack.c.b16 %v1589, %v1585
  %v1910 = vpack.c.b16 %v1594, %v1590
  %v1911 = vpack.c.b16 %v1595, %v1591
  %v1912 = vpack.c.b16 %v1596, %v1592
  %v1913 = vpack.c.b16 %v1597, %v1593
  %v1914 = vpack.c.b16 %v1602, %v1598
  %v1915 = vpack.c.b16 %v1603, %v1599
  %v1916 = vpack.c.b16 %v1604, %v1600
  %v1917 = vpack.c.b16 %v1605, %v1601
  %v1918 = vpack.c.b16 %v1610, %v1606
  %v1919 = vpack.c.b16 %v1611, %v1607
  %v1920 = vpack.c.b16 %v1612, %v1608
  %v1921 = vpack.c.b16 %v1613, %v1609
  %v1922 = vpack.c.b16 %v1618, %v1614
  %v1923 = vpack.c.b16 %v1619, %v1615
  %v1924 = vpack.c.b16 %v1620, %v1616
  %v1925 = vpack.c.b16 %v1621, %v1617
  %v1926 = vpack.c.b16 %v1626, %v1622
  %v1927 = vpack.c.b16 %v1627, %v1623
  %v1928 = vpack.c.b16 %v1628, %v1624
  %v1929 = vpack.c.b16 %v1629, %v1625
  %v1930 = vpack.c.b16 %v1634, %v1630
  %v1931 = vpack.c.b16 %v1635, %v1631
  %v1932 = vpack.c.b16 %v1636, %v1632
  %v1933 = vpack.c.b16 %v1637, %v1633
  %v1934 = vpack.c.b16 %v1642, %v1638
  %v1935 = vpack.c.b16 %v1643, %v1639
  %v1936 = vpack.c.b16 %v1644, %v1640
  %v1937 = vpack.c.b16 %v1645, %v1641
  %v1938 = vpack.c.b16 %v1650, %v1646
  %v1939 = vpack.c.b16 %v1651, %v1647
  %v1940 = vpack.c.b16 %v1652, %v1648
  %v1941 = vpack.c.b16 %v1653, %v1649
  %v1942 = vpack.c.b16 %v1658, %v1654
  %v1943 = vpack.c.b16 %v1659, %v1655
  %v1944 = vpack.c.b16 %v1660, %v1656
  %v1945 = vpack.c.b16 %v1661, %v1657
  %v1946 = vpack.c.b16 %v1666, %v1662
  %v1947 = vpack.c.b16 %v1667, %v1663
  %v1948 = vpack.c.b16 %v1668, %v1664
  %v1949 = vpack.c.b16 %v1669, %v1665
  %v1950 = vpack.c.b16 %v1674, %v1670
  %v1951 = vpack.c.b16 %v1675, %v1671
  %v1952 = vpack.c.b16 %v1676, %v1672
  %v1953 = vpack.c.b16 %v1677, %v1673
  %v1954 = vpack.c.b16 %v1682, %v1678
  %v1955 = vpack.c.b16 %v1683, %v1679
  %v1956 = vpack.c.b16 %v1684, %v1680
  %v1957 = vpack.c.b16 %v1685, %v1681
  %v1958 = vpack.c.b16 %v1690, %v1686
  %v1959 = vpack.c.b16 %v1691, %v1687
  %v1960 = vpack.c.b16 %v1692, %v1688
  %v1961 = vpack.c.b16 %v1693, %v1689
  %v1962 = vpack.c.b16 %v1698, %v1694
  %v1963 = vpack.c.b16 %v1699, %v1695
  %v1964 = vpack.c.b16 %v1700, %v1696
  %v1965 = vpack.c.b16 %v1701, %v1697
  %v1966 = vpack.c.b16 %v1706, %v1702
  %v1967 = vpack.c.b16 %v1707, %v1703
  %v1968 = vpack.c.b16 %v1708, %v1704
  %v1969 = vpack.c.b16 %v1709, %v1705
  %v1970 = vpack.c.b16 %v1714, %v1710
  %v1971 = vpack.c.b16 %v1715, %v1711
  %v1972 = vpack.c.b16 %v1716, %v1712
  %v1973 = vpack.c.b16 %v1717, %v1713
  %2230 = vmatprep.subr.bf16.mxu0 %v1719
  %2231 = vmatpush1.bf16.msra.mxu0 %v1718
  %2232 = vmatprep.subr.bf16.mxu0 %v1723
  %2233 = vmatpush1.bf16.msra.mxu0 %v1722
  %2234 = vmatprep.subr.bf16.mxu0 %v1727
  %2235 = vmatpush1.bf16.msra.mxu0 %v1726
  %2236 = vmatprep.subr.bf16.mxu0 %v1731
  %2237 = vmatpush1.bf16.msra.mxu0 %v1730
  %2238 = vmatprep.subr.bf16.mxu0 %v1735
  %2239 = vmatpush1.bf16.msra.mxu0 %v1734
  %2240 = vmatprep.subr.bf16.mxu0 %v1739
  %2241 = vmatpush1.bf16.msra.mxu0 %v1738
  %2242 = vmatprep.subr.bf16.mxu0 %v1743
  %2243 = vmatpush1.bf16.msra.mxu0 %v1742
  %2244 = vmatprep.subr.bf16.mxu0 %v1747
  %2245 = vmatpush1.bf16.msra.mxu0 %v1746
  %2246 = vmatprep.subr.bf16.mxu0 %v1751
  %2247 = vmatpush1.bf16.msra.mxu0 %v1750
  %2248 = vmatprep.subr.bf16.mxu0 %v1755
  %2249 = vmatpush1.bf16.msra.mxu0 %v1754
  %2250 = vmatprep.subr.bf16.mxu0 %v1759
  %2251 = vmatpush1.bf16.msra.mxu0 %v1758
  %2252 = vmatprep.subr.bf16.mxu0 %v1763
  %2253 = vmatpush1.bf16.msra.mxu0 %v1762
  %2254 = vmatprep.subr.bf16.mxu0 %v1767
  %2255 = vmatpush1.bf16.msra.mxu0 %v1766
  %2256 = vmatprep.subr.bf16.mxu0 %v1771
  %2257 = vmatpush1.bf16.msra.mxu0 %v1770
  %2258 = vmatprep.subr.bf16.mxu0 %v1775
  %2259 = vmatpush1.bf16.msra.mxu0 %v1774
  %2260 = vmatprep.subr.bf16.mxu0 %v1779
  %2261 = vmatpush1.bf16.msra.mxu0 %v1778
  %2262 = vmatprep.mubr.bf16.mxu0 %v664
  %2263 = vmatmul.mubr.bf16.gmra.mrb[0].mxu0 %v663
  %v2264 = vpop.f32.mrb[0].mxu0
  %v2265 = vadd.f32 %v933, %v2264
  %v2266 = vpop.f32.mrb[0].mxu0
  %v2267 = vadd.f32 %v937, %v2266
  %v2268 = vpop.f32.mrb[0].mxu0
  %v2269 = vadd.f32 %v933, %v2268
  %v2270 = vpop.f32.mrb[0].mxu0
  %v2271 = vadd.f32 %v937, %v2270
  %2272 = vdwg.mxu0
  %2273 = vmatprep.subr.bf16.mxu0 %v1783
  %2274 = vmatpush1.bf16.msra.mxu0 %v1782
  %2275 = vmatprep.subr.bf16.mxu0 %v1787
  %2276 = vmatpush1.bf16.msra.mxu0 %v1786
  %2277 = vmatprep.subr.bf16.mxu0 %v1791
  %2278 = vmatpush1.bf16.msra.mxu0 %v1790
  %2279 = vmatprep.subr.bf16.mxu0 %v1795
  %2280 = vmatpush1.bf16.msra.mxu0 %v1794
  %2281 = vmatprep.subr.bf16.mxu0 %v1799
  %2282 = vmatpush1.bf16.msra.mxu0 %v1798
  %2283 = vmatprep.subr.bf16.mxu0 %v1803
  %2284 = vmatpush1.bf16.msra.mxu0 %v1802
  %2285 = vmatprep.subr.bf16.mxu0 %v1807
  %2286 = vmatpush1.bf16.msra.mxu0 %v1806
  %2287 = vmatprep.subr.bf16.mxu0 %v1811
  %2288 = vmatpush1.bf16.msra.mxu0 %v1810
  %2289 = vmatprep.subr.bf16.mxu0 %v1815
  %2290 = vmatpush1.bf16.msra.mxu0 %v1814
  %2291 = vmatprep.subr.bf16.mxu0 %v1819
  %2292 = vmatpush1.bf16.msra.mxu0 %v1818
  %2293 = vmatprep.subr.bf16.mxu0 %v1823
  %2294 = vmatpush1.bf16.msra.mxu0 %v1822
  %2295 = vmatprep.subr.bf16.mxu0 %v1827
  %2296 = vmatpush1.bf16.msra.mxu0 %v1826
  %2297 = vmatprep.subr.bf16.mxu0 %v1831
  %2298 = vmatpush1.bf16.msra.mxu0 %v1830
  %2299 = vmatprep.subr.bf16.mxu0 %v1835
  %2300 = vmatpush1.bf16.msra.mxu0 %v1834
  %2301 = vmatprep.subr.bf16.mxu0 %v1839
  %2302 = vmatpush1.bf16.msra.mxu0 %v1838
  %2303 = vmatprep.subr.bf16.mxu0 %v1843
  %2304 = vmatpush1.bf16.msra.mxu0 %v1842
  %2305 = vmatprep.mubr.bf16.mxu0 %v666
  %2306 = vmatmul.mubr.bf16.gmra.mrb[0].mxu0 %v665
  %v2307 = vpop.f32.mrb[0].mxu0
  %v2308 = vadd.f32 %v2265, %v2307
  %v2309 = vpop.f32.mrb[0].mxu0
  %v2310 = vadd.f32 %v2267, %v2309
  %v2311 = vpop.f32.mrb[0].mxu0
  %v2312 = vadd.f32 %v2269, %v2311
  %v2313 = vpop.f32.mrb[0].mxu0
  %v2314 = vadd.f32 %v2271, %v2313
  %2315 = vdwg.mxu0
  %2316 = vmatprep.subr.bf16.mxu0 %v1847
  %2317 = vmatpush1.bf16.msra.mxu0 %v1846
  %2318 = vmatprep.subr.bf16.mxu0 %v1851
  %2319 = vmatpush1.bf16.msra.mxu0 %v1850
  %2320 = vmatprep.subr.bf16.mxu0 %v1855
  %2321 = vmatpush1.bf16.msra.mxu0 %v1854
  %2322 = vmatprep.subr.bf16.mxu0 %v1859
  %2323 = vmatpush1.bf16.msra.mxu0 %v1858
  %2324 = vmatprep.subr.bf16.mxu0 %v1863
  %2325 = vmatpush1.bf16.msra.mxu0 %v1862
  %2326 = vmatprep.subr.bf16.mxu0 %v1867
  %2327 = vmatpush1.bf16.msra.mxu0 %v1866
  %2328 = vmatprep.subr.bf16.mxu0 %v1871
  %2329 = vmatpush1.bf16.msra.mxu0 %v1870
  %2330 = vmatprep.subr.bf16.mxu0 %v1875
  %2331 = vmatpush1.bf16.msra.mxu0 %v1874
  %2332 = vmatprep.subr.bf16.mxu0 %v1879
  %2333 = vmatpush1.bf16.msra.mxu0 %v1878
  %2334 = vmatprep.subr.bf16.mxu0 %v1883
  %2335 = vmatpush1.bf16.msra.mxu0 %v1882
  %2336 = vmatprep.subr.bf16.mxu0 %v1887
  %2337 = vmatpush1.bf16.msra.mxu0 %v1886
  %2338 = vmatprep.subr.bf16.mxu0 %v1891
  %2339 = vmatpush1.bf16.msra.mxu0 %v1890
  %2340 = vmatprep.subr.bf16.mxu0 %v1895
  %2341 = vmatpush1.bf16.msra.mxu0 %v1894
  %2342 = vmatprep.subr.bf16.mxu0 %v1899
  %2343 = vmatpush1.bf16.msra.mxu0 %v1898
  %2344 = vmatprep.subr.bf16.mxu0 %v1903
  %2345 = vmatpush1.bf16.msra.mxu0 %v1902
  %2346 = vmatprep.subr.bf16.mxu0 %v1907
  %2347 = vmatpush1.bf16.msra.mxu0 %v1906
  %2348 = vmatprep.mubr.bf16.mxu0 %v668
  %2349 = vmatmul.mubr.bf16.gmra.mrb[0].mxu0 %v667
  %v2350 = vpop.f32.mrb[0].mxu0
  %v2351 = vadd.f32 %v2308, %v2350
  %v2352 = vpop.f32.mrb[0].mxu0
  %v2353 = vadd.f32 %v2310, %v2352
  %v2354 = vpop.f32.mrb[0].mxu0
  %v2355 = vadd.f32 %v2312, %v2354
  %v2356 = vpop.f32.mrb[0].mxu0
  %v2357 = vadd.f32 %v2314, %v2356
  %2358 = vdwg.mxu0
  %2359 = vmatprep.subr.bf16.mxu0 %v1911
  %2360 = vmatpush1.bf16.msra.mxu0 %v1910
  %2361 = vmatprep.subr.bf16.mxu0 %v1915
  %2362 = vmatpush1.bf16.msra.mxu0 %v1914
  %2363 = vmatprep.subr.bf16.mxu0 %v1919
  %2364 = vmatpush1.bf16.msra.mxu0 %v1918
  %2365 = vmatprep.subr.bf16.mxu0 %v1923
  %2366 = vmatpush1.bf16.msra.mxu0 %v1922
  %2367 = vmatprep.subr.bf16.mxu0 %v1927
  %2368 = vmatpush1.bf16.msra.mxu0 %v1926
  %2369 = vmatprep.subr.bf16.mxu0 %v1931
  %2370 = vmatpush1.bf16.msra.mxu0 %v1930
  %2371 = vmatprep.subr.bf16.mxu0 %v1935
  %2372 = vmatpush1.bf16.msra.mxu0 %v1934
  %2373 = vmatprep.subr.bf16.mxu0 %v1939
  %2374 = vmatpush1.bf16.msra.mxu0 %v1938
  %2375 = vmatprep.subr.bf16.mxu0 %v1943
  %2376 = vmatpush1.bf16.msra.mxu0 %v1942
  %2377 = vmatprep.subr.bf16.mxu0 %v1947
  %2378 = vmatpush1.bf16.msra.mxu0 %v1946
  %2379 = vmatprep.subr.bf16.mxu0 %v1951
  %2380 = vmatpush1.bf16.msra.mxu0 %v1950
  %2381 = vmatprep.subr.bf16.mxu0 %v1955
  %2382 = vmatpush1.bf16.msra.mxu0 %v1954
  %2383 = vmatprep.subr.bf16.mxu0 %v1959
  %2384 = vmatpush1.bf16.msra.mxu0 %v1958
  %2385 = vmatprep.subr.bf16.mxu0 %v1963
  %2386 = vmatpush1.bf16.msra.mxu0 %v1962
  %2387 = vmatprep.subr.bf16.mxu0 %v1967
  %2388 = vmatpush1.bf16.msra.mxu0 %v1966
  %2389 = vmatprep.subr.bf16.mxu0 %v1971
  %2390 = vmatpush1.bf16.msra.mxu0 %v1970
  %2391 = vmatprep.mubr.bf16.mxu0 %v670
  %2392 = vmatmul.mubr.bf16.gmra.mrb[0].mxu0 %v669
  %v2393 = vpop.f32.mrb[0].mxu0
  %v2394 = vadd.f32 %v2351, %v2393
  %v2395 = vpop.f32.mrb[0].mxu0
  %v2396 = vadd.f32 %v2353, %v2395
  %v2397 = vpop.f32.mrb[0].mxu0
  %v2398 = vadd.f32 %v2355, %v2397
  %v2399 = vpop.f32.mrb[0].mxu0
  %v2400 = vadd.f32 %v2357, %v2399
  %2401 = vdwg.mxu0
  %2402 = vmatprep.subr.bf16.mxu0 %v1721
  %2403 = vmatpush1.bf16.msra.mxu0 %v1720
  %2404 = vmatprep.subr.bf16.mxu0 %v1725
  %2405 = vmatpush1.bf16.msra.mxu0 %v1724
  %2406 = vmatprep.subr.bf16.mxu0 %v1729
  %2407 = vmatpush1.bf16.msra.mxu0 %v1728
  %2408 = vmatprep.subr.bf16.mxu0 %v1733
  %2409 = vmatpush1.bf16.msra.mxu0 %v1732
  %2410 = vmatprep.subr.bf16.mxu0 %v1737
  %2411 = vmatpush1.bf16.msra.mxu0 %v1736
  %2412 = vmatprep.subr.bf16.mxu0 %v1741
  %2413 = vmatpush1.bf16.msra.mxu0 %v1740
  %2414 = vmatprep.subr.bf16.mxu0 %v1745
  %2415 = vmatpush1.bf16.msra.mxu0 %v1744
  %2416 = vmatprep.subr.bf16.mxu0 %v1749
  %2417 = vmatpush1.bf16.msra.mxu0 %v1748
  %2418 = vmatprep.subr.bf16.mxu0 %v1753
  %2419 = vmatpush1.bf16.msra.mxu0 %v1752
  %2420 = vmatprep.subr.bf16.mxu0 %v1757
  %2421 = vmatpush1.bf16.msra.mxu0 %v1756
  %2422 = vmatprep.subr.bf16.mxu0 %v1761
  %2423 = vmatpush1.bf16.msra.mxu0 %v1760
  %2424 = vmatprep.subr.bf16.mxu0 %v1765
  %2425 = vmatpush1.bf16.msra.mxu0 %v1764
  %2426 = vmatprep.subr.bf16.mxu0 %v1769
  %2427 = vmatpush1.bf16.msra.mxu0 %v1768
  %2428 = vmatprep.subr.bf16.mxu0 %v1773
  %2429 = vmatpush1.bf16.msra.mxu0 %v1772
  %2430 = vmatprep.subr.bf16.mxu0 %v1777
  %2431 = vmatpush1.bf16.msra.mxu0 %v1776
  %2432 = vmatprep.subr.bf16.mxu0 %v1781
  %2433 = vmatpush1.bf16.msra.mxu0 %v1780
  %2434 = vmatprep.mubr.bf16.mxu0 %v664
  %2435 = vmatmul.mubr.bf16.gmra.mrb[0].mxu0 %v663
  %v2436 = vpop.f32.mrb[0].mxu0
  %v2437 = vadd.f32 %v941, %v2436
  %v2438 = vpop.f32.mrb[0].mxu0
  %v2439 = vadd.f32 %v945, %v2438
  %v2440 = vpop.f32.mrb[0].mxu0
  %v2441 = vadd.f32 %v941, %v2440
  %v2442 = vpop.f32.mrb[0].mxu0
  %v2443 = vadd.f32 %v945, %v2442
  %2444 = vdwg.mxu0
  %2445 = vmatprep.subr.bf16.mxu0 %v1785
  %2446 = vmatpush1.bf16.msra.mxu0 %v1784
  %2447 = vmatprep.subr.bf16.mxu0 %v1789
  %2448 = vmatpush1.bf16.msra.mxu0 %v1788
  %2449 = vmatprep.subr.bf16.mxu0 %v1793
  %2450 = vmatpush1.bf16.msra.mxu0 %v1792
  %2451 = vmatprep.subr.bf16.mxu0 %v1797
  %2452 = vmatpush1.bf16.msra.mxu0 %v1796
  %2453 = vmatprep.subr.bf16.mxu0 %v1801
  %2454 = vmatpush1.bf16.msra.mxu0 %v1800
  %2455 = vmatprep.subr.bf16.mxu0 %v1805
  %2456 = vmatpush1.bf16.msra.mxu0 %v1804
  %2457 = vmatprep.subr.bf16.mxu0 %v1809
  %2458 = vmatpush1.bf16.msra.mxu0 %v1808
  %2459 = vmatprep.subr.bf16.mxu0 %v1813
  %2460 = vmatpush1.bf16.msra.mxu0 %v1812
  %2461 = vmatprep.subr.bf16.mxu0 %v1817
  %2462 = vmatpush1.bf16.msra.mxu0 %v1816
  %2463 = vmatprep.subr.bf16.mxu0 %v1821
  %2464 = vmatpush1.bf16.msra.mxu0 %v1820
  %2465 = vmatprep.subr.bf16.mxu0 %v1825
  %2466 = vmatpush1.bf16.msra.mxu0 %v1824
  %2467 = vmatprep.subr.bf16.mxu0 %v1829
  %2468 = vmatpush1.bf16.msra.mxu0 %v1828
  %2469 = vmatprep.subr.bf16.mxu0 %v1833
  %2470 = vmatpush1.bf16.msra.mxu0 %v1832
  %2471 = vmatprep.subr.bf16.mxu0 %v1837
  %2472 = vmatpush1.bf16.msra.mxu0 %v1836
  %2473 = vmatprep.subr.bf16.mxu0 %v1841
  %2474 = vmatpush1.bf16.msra.mxu0 %v1840
  %2475 = vmatprep.subr.bf16.mxu0 %v1845
  %2476 = vmatpush1.bf16.msra.mxu0 %v1844
  %2477 = vmatprep.mubr.bf16.mxu0 %v666
  %2478 = vmatmul.mubr.bf16.gmra.mrb[0].mxu0 %v665
  %v2479 = vpop.f32.mrb[0].mxu0
  %v2480 = vadd.f32 %v2437, %v2479
  %v2481 = vpop.f32.mrb[0].mxu0
  %v2482 = vadd.f32 %v2439, %v2481
  %v2483 = vpop.f32.mrb[0].mxu0
  %v2484 = vadd.f32 %v2441, %v2483
  %v2485 = vpop.f32.mrb[0].mxu0
  %v2486 = vadd.f32 %v2443, %v2485
  %2487 = vdwg.mxu0
  %2488 = vmatprep.subr.bf16.mxu0 %v1849
  %2489 = vmatpush1.bf16.msra.mxu0 %v1848
  %2490 = vmatprep.subr.bf16.mxu0 %v1853
  %2491 = vmatpush1.bf16.msra.mxu0 %v1852
  %2492 = vmatprep.subr.bf16.mxu0 %v1857
  %2493 = vmatpush1.bf16.msra.mxu0 %v1856
  %2494 = vmatprep.subr.bf16.mxu0 %v1861
  %2495 = vmatpush1.bf16.msra.mxu0 %v1860
  %2496 = vmatprep.subr.bf16.mxu0 %v1865
  %2497 = vmatpush1.bf16.msra.mxu0 %v1864
  %2498 = vmatprep.subr.bf16.mxu0 %v1869
  %2499 = vmatpush1.bf16.msra.mxu0 %v1868
  %2500 = vmatprep.subr.bf16.mxu0 %v1873
  %2501 = vmatpush1.bf16.msra.mxu0 %v1872
  %2502 = vmatprep.subr.bf16.mxu0 %v1877
  %2503 = vmatpush1.bf16.msra.mxu0 %v1876
  %2504 = vmatprep.subr.bf16.mxu0 %v1881
  %2505 = vmatpush1.bf16.msra.mxu0 %v1880
  %2506 = vmatprep.subr.bf16.mxu0 %v1885
  %2507 = vmatpush1.bf16.msra.mxu0 %v1884
  %2508 = vmatprep.subr.bf16.mxu0 %v1889
  %2509 = vmatpush1.bf16.msra.mxu0 %v1888
  %2510 = vmatprep.subr.bf16.mxu0 %v1893
  %2511 = vmatpush1.bf16.msra.mxu0 %v1892
  %2512 = vmatprep.subr.bf16.mxu0 %v1897
  %2513 = vmatpush1.bf16.msra.mxu0 %v1896
  %2514 = vmatprep.subr.bf16.mxu0 %v1901
  %2515 = vmatpush1.bf16.msra.mxu0 %v1900
  %2516 = vmatprep.subr.bf16.mxu0 %v1905
  %2517 = vmatpush1.bf16.msra.mxu0 %v1904
  %2518 = vmatprep.subr.bf16.mxu0 %v1909
  %2519 = vmatpush1.bf16.msra.mxu0 %v1908
  %2520 = vmatprep.mubr.bf16.mxu0 %v668
  %2521 = vmatmul.mubr.bf16.gmra.mrb[0].mxu0 %v667
  %v2522 = vpop.f32.mrb[0].mxu0
  %v2523 = vadd.f32 %v2480, %v2522
  %v2524 = vpop.f32.mrb[0].mxu0
  %v2525 = vadd.f32 %v2482, %v2524
  %v2526 = vpop.f32.mrb[0].mxu0
  %v2527 = vadd.f32 %v2484, %v2526
  %v2528 = vpop.f32.mrb[0].mxu0
  %v2529 = vadd.f32 %v2486, %v2528
  %2530 = vdwg.mxu0
  %2531 = vmatprep.subr.bf16.mxu0 %v1913
  %2532 = vmatpush1.bf16.msra.mxu0 %v1912
  %2533 = vmatprep.subr.bf16.mxu0 %v1917
  %2534 = vmatpush1.bf16.msra.mxu0 %v1916
  %2535 = vmatprep.subr.bf16.mxu0 %v1921
  %2536 = vmatpush1.bf16.msra.mxu0 %v1920
  %2537 = vmatprep.subr.bf16.mxu0 %v1925
  %2538 = vmatpush1.bf16.msra.mxu0 %v1924
  %2539 = vmatprep.subr.bf16.mxu0 %v1929
  %2540 = vmatpush1.bf16.msra.mxu0 %v1928
  %2541 = vmatprep.subr.bf16.mxu0 %v1933
  %2542 = vmatpush1.bf16.msra.mxu0 %v1932
  %2543 = vmatprep.subr.bf16.mxu0 %v1937
  %2544 = vmatpush1.bf16.msra.mxu0 %v1936
  %2545 = vmatprep.subr.bf16.mxu0 %v1941
  %2546 = vmatpush1.bf16.msra.mxu0 %v1940
  %2547 = vmatprep.subr.bf16.mxu0 %v1945
  %2548 = vmatpush1.bf16.msra.mxu0 %v1944
  %2549 = vmatprep.subr.bf16.mxu0 %v1949
  %2550 = vmatpush1.bf16.msra.mxu0 %v1948
  %2551 = vmatprep.subr.bf16.mxu0 %v1953
  %2552 = vmatpush1.bf16.msra.mxu0 %v1952
  %2553 = vmatprep.subr.bf16.mxu0 %v1957
  %2554 = vmatpush1.bf16.msra.mxu0 %v1956
  %2555 = vmatprep.subr.bf16.mxu0 %v1961
  %2556 = vmatpush1.bf16.msra.mxu0 %v1960
  %2557 = vmatprep.subr.bf16.mxu0 %v1965
  %2558 = vmatpush1.bf16.msra.mxu0 %v1964
  %2559 = vmatprep.subr.bf16.mxu0 %v1969
  %2560 = vmatpush1.bf16.msra.mxu0 %v1968
  %2561 = vmatprep.subr.bf16.mxu0 %v1973
  %2562 = vmatpush1.bf16.msra.mxu0 %v1972
  %2563 = vmatprep.mubr.bf16.mxu0 %v670
  %2564 = vmatmul.mubr.bf16.gmra.mrb[0].mxu0 %v669
  %v2565 = vpop.f32.mrb[0].mxu0
  %v2566 = vadd.f32 %v2523, %v2565
  %v2567 = vpop.f32.mrb[0].mxu0
  %v2568 = vadd.f32 %v2525, %v2567
  %v2569 = vpop.f32.mrb[0].mxu0
  %v2570 = vadd.f32 %v2527, %v2569
  %v2571 = vpop.f32.mrb[0].mxu0
  %v2572 = vadd.f32 %v2529, %v2571
  %2573 = vdwg.mxu0
  %v2574 = vpack.c.bf16 %v2398, %v2394
  %v2575 = vpack.c.bf16 %v2400, %v2396
  %v2576 = vpack.c.bf16 %v2570, %v2566
  %v2577 = vpack.c.bf16 %v2572, %v2568
  %vm2578 = vcmp.gt.bf16.partialorder %v2574, 0
  %vm2579 = vcmp.gt.bf16.partialorder %v2575, 0
  %vm2580 = vcmp.gt.bf16.partialorder %v2576, 0
  %vm2581 = vcmp.gt.bf16.partialorder %v2577, 0
  %v2582 = vmul.bf16 %v2574, 1009007652
  %v2583 = vmul.bf16 %v2575, 1009007652
  %v2584 = vmul.bf16 %v2576, 1009007652
  %v2585 = vmul.bf16 %v2577, 1009007652
  %v2586 = vsel %vm2578, %v2574, %v2582
  %v2587 = vsel %vm2579, %v2575, %v2583
  %v2588 = vsel %vm2580, %v2576, %v2584
  %v2589 = vsel %vm2581, %v2577, %v2585
  %v2590 = vld [vmem:[%s3] sm:$0xff]
  %v2591 = vld [vmem:[%s3 + $0x8] sm:$0xff]
  %v2592 = vld [vmem:[%s3 + $0x10] sm:$0xff]
  %v2593 = vld [vmem:[%s3 + $0x18] sm:$0xff]
  %v2594 = vld [vmem:[%s3 + $0x20] sm:$0xff]
  %v2595 = vld [vmem:[%s3 + $0x28] sm:$0xff]
  %v2596 = vld [vmem:[%s3 + $0x30] sm:$0xff]
  %v2597 = vld [vmem:[%s3 + $0x38] sm:$0xff]
  %v2598 = vld [vmem:[%s3 + $0x40] sm:$0xff]
  %v2599 = vld [vmem:[%s3 + $0x48] sm:$0xff]
  %v2600 = vld [vmem:[%s3 + $0x50] sm:$0xff]
  %v2601 = vld [vmem:[%s3 + $0x58] sm:$0xff]
  %v2602 = vld [vmem:[%s3 + $0x60] sm:$0xff]
  %v2603 = vld [vmem:[%s3 + $0x68] sm:$0xff]
  %v2604 = vld [vmem:[%s3 + $0x70] sm:$0xff]
  %v2605 = vld [vmem:[%s3 + $0x78] sm:$0xff]
  %v2606 = vld [vmem:[%s3 + $0x80] sm:$0xff]
  %v2607 = vld [vmem:[%s3 + $0x88] sm:$0xff]
  %v2608 = vld [vmem:[%s3 + $0x90] sm:$0xff]
  %v2609 = vld [vmem:[%s3 + $0x98] sm:$0xff]
  %v2610 = vld [vmem:[%s3 + $0xa0] sm:$0xff]
  %v2611 = vld [vmem:[%s3 + $0xa8] sm:$0xff]
  %v2612 = vld [vmem:[%s3 + $0xb0] sm:$0xff]
  %v2613 = vld [vmem:[%s3 + $0xb8] sm:$0xff]
  %v2614 = vld [vmem:[%s3 + $0xc0] sm:$0xff]
  %v2615 = vld [vmem:[%s3 + $0xc8] sm:$0xff]
  %v2616 = vld [vmem:[%s3 + $0xd0] sm:$0xff]
  %v2617 = vld [vmem:[%s3 + $0xd8] sm:$0xff]
  %v2618 = vld [vmem:[%s3 + $0xe0] sm:$0xff]
  %v2619 = vld [vmem:[%s3 + $0xe8] sm:$0xff]
  %v2620 = vld [vmem:[%s3 + $0xf0] sm:$0xff]
  %v2621 = vld [vmem:[%s3 + $0xf8] sm:$0xff]
  %v2622 = vld [vmem:[%s3 + $0x100] sm:$0xff]
  %v2623 = vld [vmem:[%s3 + $0x108] sm:$0xff]
  %v2624 = vld [vmem:[%s3 + $0x110] sm:$0xff]
  %v2625 = vld [vmem:[%s3 + $0x118] sm:$0xff]
  %v2626 = vld [vmem:[%s3 + $0x120] sm:$0xff]
  %v2627 = vld [vmem:[%s3 + $0x128] sm:$0xff]
  %v2628 = vld [vmem:[%s3 + $0x130] sm:$0xff]
  %v2629 = vld [vmem:[%s3 + $0x138] sm:$0xff]
  %v2630 = vld [vmem:[%s3 + $0x140] sm:$0xff]
  %v2631 = vld [vmem:[%s3 + $0x148] sm:$0xff]
  %v2632 = vld [vmem:[%s3 + $0x150] sm:$0xff]
  %v2633 = vld [vmem:[%s3 + $0x158] sm:$0xff]
  %v2634 = vld [vmem:[%s3 + $0x160] sm:$0xff]
  %v2635 = vld [vmem:[%s3 + $0x168] sm:$0xff]
  %v2636 = vld [vmem:[%s3 + $0x170] sm:$0xff]
  %v2637 = vld [vmem:[%s3 + $0x178] sm:$0xff]
  %v2638 = vld [vmem:[%s3 + $0x180] sm:$0xff]
  %v2639 = vld [vmem:[%s3 + $0x188] sm:$0xff]
  %v2640 = vld [vmem:[%s3 + $0x190] sm:$0xff]
  %v2641 = vld [vmem:[%s3 + $0x198] sm:$0xff]
  %v2642 = vld [vmem:[%s3 + $0x1a0] sm:$0xff]
  %v2643 = vld [vmem:[%s3 + $0x1a8] sm:$0xff]
  %v2644 = vld [vmem:[%s3 + $0x1b0] sm:$0xff]
  %v2645 = vld [vmem:[%s3 + $0x1b8] sm:$0xff]
  %v2646 = vld [vmem:[%s3 + $0x1c0] sm:$0xff]
  %v2647 = vld [vmem:[%s3 + $0x1c8] sm:$0xff]
  %v2648 = vld [vmem:[%s3 + $0x1d0] sm:$0xff]
  %v2649 = vld [vmem:[%s3 + $0x1d8] sm:$0xff]
  %v2650 = vld [vmem:[%s3 + $0x1e0] sm:$0xff]
  %v2651 = vld [vmem:[%s3 + $0x1e8] sm:$0xff]
  %v2652 = vld [vmem:[%s3 + $0x1f0] sm:$0xff]
  %v2653 = vld [vmem:[%s3 + $0x1f8] sm:$0xff]
  %s2654 = scalar_lea.vmem %s7, 2
  %v2655 = vld [vmem:[%s2654] ss:$8 sm:$0x3]
  %v2657 = vlaneseq
  %v2658 = vshrl.u32 %v2657, 7
  %v2659 = vsub.s32 0, %v2658
  %v2660 = vrot.slane %v2655, %v2659
  %v2661 = vlaneseq
  %v2662 = vshrl.u32 %v2661, 7
  %v2663 = vsub.s32 1, %v2662
  %v2664 = vrot.slane %v2655, %v2663
  %v2731 = vunpack.c.l.b16 %v2590
  %v2732 = vunpack.c.h.b16 %v2590
  %v2733 = vunpack.c.l.b16 %v2591
  %v2734 = vunpack.c.h.b16 %v2591
  %v2735 = vunpack.c.l.b16 %v2592
  %v2736 = vunpack.c.h.b16 %v2592
  %v2737 = vunpack.c.l.b16 %v2593
  %v2738 = vunpack.c.h.b16 %v2593
  %v2739 = vunpack.c.l.b16 %v2594
  %v2740 = vunpack.c.h.b16 %v2594
  %v2741 = vunpack.c.l.b16 %v2595
  %v2742 = vunpack.c.h.b16 %v2595
  %v2743 = vunpack.c.l.b16 %v2596
  %v2744 = vunpack.c.h.b16 %v2596
  %v2745 = vunpack.c.l.b16 %v2597
  %v2746 = vunpack.c.h.b16 %v2597
  %v2747 = vunpack.c.l.b16 %v2598
  %v2748 = vunpack.c.h.b16 %v2598
  %v2749 = vunpack.c.l.b16 %v2599
  %v2750 = vunpack.c.h.b16 %v2599
  %v2751 = vunpack.c.l.b16 %v2600
  %v2752 = vunpack.c.h.b16 %v2600
  %v2753 = vunpack.c.l.b16 %v2601
  %v2754 = vunpack.c.h.b16 %v2601
  %v2755 = vunpack.c.l.b16 %v2602
  %v2756 = vunpack.c.h.b16 %v2602
  %v2757 = vunpack.c.l.b16 %v2603
  %v2758 = vunpack.c.h.b16 %v2603
  %v2759 = vunpack.c.l.b16 %v2604
  %v2760 = vunpack.c.h.b16 %v2604
  %v2761 = vunpack.c.l.b16 %v2605
  %v2762 = vunpack.c.h.b16 %v2605
  %v2763 = vunpack.c.l.b16 %v2606
  %v2764 = vunpack.c.h.b16 %v2606
  %v2765 = vunpack.c.l.b16 %v2607
  %v2766 = vunpack.c.h.b16 %v2607
  %v2767 = vunpack.c.l.b16 %v2608
  %v2768 = vunpack.c.h.b16 %v2608
  %v2769 = vunpack.c.l.b16 %v2609
  %v2770 = vunpack.c.h.b16 %v2609
  %v2771 = vunpack.c.l.b16 %v2610
  %v2772 = vunpack.c.h.b16 %v2610
  %v2773 = vunpack.c.l.b16 %v2611
  %v2774 = vunpack.c.h.b16 %v2611
  %v2775 = vunpack.c.l.b16 %v2612
  %v2776 = vunpack.c.h.b16 %v2612
  %v2777 = vunpack.c.l.b16 %v2613
  %v2778 = vunpack.c.h.b16 %v2613
  %v2779 = vunpack.c.l.b16 %v2614
  %v2780 = vunpack.c.h.b16 %v2614
  %v2781 = vunpack.c.l.b16 %v2615
  %v2782 = vunpack.c.h.b16 %v2615
  %v2783 = vunpack.c.l.b16 %v2616
  %v2784 = vunpack.c.h.b16 %v2616
  %v2785 = vunpack.c.l.b16 %v2617
  %v2786 = vunpack.c.h.b16 %v2617
  %v2787 = vunpack.c.l.b16 %v2618
  %v2788 = vunpack.c.h.b16 %v2618
  %v2789 = vunpack.c.l.b16 %v2619
  %v2790 = vunpack.c.h.b16 %v2619
  %v2791 = vunpack.c.l.b16 %v2620
  %v2792 = vunpack.c.h.b16 %v2620
  %v2793 = vunpack.c.l.b16 %v2621
  %v2794 = vunpack.c.h.b16 %v2621
  %v2795 = vunpack.c.l.b16 %v2622
  %v2796 = vunpack.c.h.b16 %v2622
  %v2797 = vunpack.c.l.b16 %v2623
  %v2798 = vunpack.c.h.b16 %v2623
  %v2799 = vunpack.c.l.b16 %v2624
  %v2800 = vunpack.c.h.b16 %v2624
  %v2801 = vunpack.c.l.b16 %v2625
  %v2802 = vunpack.c.h.b16 %v2625
  %v2803 = vunpack.c.l.b16 %v2626
  %v2804 = vunpack.c.h.b16 %v2626
  %v2805 = vunpack.c.l.b16 %v2627
  %v2806 = vunpack.c.h.b16 %v2627
  %v2807 = vunpack.c.l.b16 %v2628
  %v2808 = vunpack.c.h.b16 %v2628
  %v2809 = vunpack.c.l.b16 %v2629
  %v2810 = vunpack.c.h.b16 %v2629
  %v2811 = vunpack.c.l.b16 %v2630
  %v2812 = vunpack.c.h.b16 %v2630
  %v2813 = vunpack.c.l.b16 %v2631
  %v2814 = vunpack.c.h.b16 %v2631
  %v2815 = vunpack.c.l.b16 %v2632
  %v2816 = vunpack.c.h.b16 %v2632
  %v2817 = vunpack.c.l.b16 %v2633
  %v2818 = vunpack.c.h.b16 %v2633
  %v2819 = vunpack.c.l.b16 %v2634
  %v2820 = vunpack.c.h.b16 %v2634
  %v2821 = vunpack.c.l.b16 %v2635
  %v2822 = vunpack.c.h.b16 %v2635
  %v2823 = vunpack.c.l.b16 %v2636
  %v2824 = vunpack.c.h.b16 %v2636
  %v2825 = vunpack.c.l.b16 %v2637
  %v2826 = vunpack.c.h.b16 %v2637
  %v2827 = vunpack.c.l.b16 %v2638
  %v2828 = vunpack.c.h.b16 %v2638
  %v2829 = vunpack.c.l.b16 %v2639
  %v2830 = vunpack.c.h.b16 %v2639
  %v2831 = vunpack.c.l.b16 %v2640
  %v2832 = vunpack.c.h.b16 %v2640
  %v2833 = vunpack.c.l.b16 %v2641
  %v2834 = vunpack.c.h.b16 %v2641
  %v2835 = vunpack.c.l.b16 %v2642
  %v2836 = vunpack.c.h.b16 %v2642
  %v2837 = vunpack.c.l.b16 %v2643
  %v2838 = vunpack.c.h.b16 %v2643
  %v2839 = vunpack.c.l.b16 %v2644
  %v2840 = vunpack.c.h.b16 %v2644
  %v2841 = vunpack.c.l.b16 %v2645
  %v2842 = vunpack.c.h.b16 %v2645
  %v2843 = vunpack.c.l.b16 %v2646
  %v2844 = vunpack.c.h.b16 %v2646
  %v2845 = vunpack.c.l.b16 %v2647
  %v2846 = vunpack.c.h.b16 %v2647
  %v2847 = vunpack.c.l.b16 %v2648
  %v2848 = vunpack.c.h.b16 %v2648
  %v2849 = vunpack.c.l.b16 %v2649
  %v2850 = vunpack.c.h.b16 %v2649
  %v2851 = vunpack.c.l.b16 %v2650
  %v2852 = vunpack.c.h.b16 %v2650
  %v2853 = vunpack.c.l.b16 %v2651
  %v2854 = vunpack.c.h.b16 %v2651
  %v2855 = vunpack.c.l.b16 %v2652
  %v2856 = vunpack.c.h.b16 %v2652
  %v2857 = vunpack.c.l.b16 %v2653
  %v2858 = vunpack.c.h.b16 %v2653
  %v2859 = vpack.c.b16 %v2733, %v2731
  %v2860 = vpack.c.b16 %v2734, %v2732
  %v2861 = vpack.c.b16 %v2737, %v2735
  %v2862 = vpack.c.b16 %v2738, %v2736
  %v2863 = vpack.c.b16 %v2741, %v2739
  %v2864 = vpack.c.b16 %v2742, %v2740
  %v2865 = vpack.c.b16 %v2745, %v2743
  %v2866 = vpack.c.b16 %v2746, %v2744
  %v2867 = vpack.c.b16 %v2749, %v2747
  %v2868 = vpack.c.b16 %v2750, %v2748
  %v2869 = vpack.c.b16 %v2753, %v2751
  %v2870 = vpack.c.b16 %v2754, %v2752
  %v2871 = vpack.c.b16 %v2757, %v2755
  %v2872 = vpack.c.b16 %v2758, %v2756
  %v2873 = vpack.c.b16 %v2761, %v2759
  %v2874 = vpack.c.b16 %v2762, %v2760
  %v2875 = vpack.c.b16 %v2765, %v2763
  %v2876 = vpack.c.b16 %v2766, %v2764
  %v2877 = vpack.c.b16 %v2769, %v2767
  %v2878 = vpack.c.b16 %v2770, %v2768
  %v2879 = vpack.c.b16 %v2773, %v2771
  %v2880 = vpack.c.b16 %v2774, %v2772
  %v2881 = vpack.c.b16 %v2777, %v2775
  %v2882 = vpack.c.b16 %v2778, %v2776
  %v2883 = vpack.c.b16 %v2781, %v2779
  %v2884 = vpack.c.b16 %v2782, %v2780
  %v2885 = vpack.c.b16 %v2785, %v2783
  %v2886 = vpack.c.b16 %v2786, %v2784
  %v2887 = vpack.c.b16 %v2789, %v2787
  %v2888 = vpack.c.b16 %v2790, %v2788
  %v2889 = vpack.c.b16 %v2793, %v2791
  %v2890 = vpack.c.b16 %v2794, %v2792
  %v2891 = vpack.c.b16 %v2797, %v2795
  %v2892 = vpack.c.b16 %v2798, %v2796
  %v2893 = vpack.c.b16 %v2801, %v2799
  %v2894 = vpack.c.b16 %v2802, %v2800
  %v2895 = vpack.c.b16 %v2805, %v2803
  %v2896 = vpack.c.b16 %v2806, %v2804
  %v2897 = vpack.c.b16 %v2809, %v2807
  %v2898 = vpack.c.b16 %v2810, %v2808
  %v2899 = vpack.c.b16 %v2813, %v2811
  %v2900 = vpack.c.b16 %v2814, %v2812
  %v2901 = vpack.c.b16 %v2817, %v2815
  %v2902 = vpack.c.b16 %v2818, %v2816
  %v2903 = vpack.c.b16 %v2821, %v2819
  %v2904 = vpack.c.b16 %v2822, %v2820
  %v2905 = vpack.c.b16 %v2825, %v2823
  %v2906 = vpack.c.b16 %v2826, %v2824
  %v2907 = vpack.c.b16 %v2829, %v2827
  %v2908 = vpack.c.b16 %v2830, %v2828
  %v2909 = vpack.c.b16 %v2833, %v2831
  %v2910 = vpack.c.b16 %v2834, %v2832
  %v2911 = vpack.c.b16 %v2837, %v2835
  %v2912 = vpack.c.b16 %v2838, %v2836
  %v2913 = vpack.c.b16 %v2841, %v2839
  %v2914 = vpack.c.b16 %v2842, %v2840
  %v2915 = vpack.c.b16 %v2845, %v2843
  %v2916 = vpack.c.b16 %v2846, %v2844
  %v2917 = vpack.c.b16 %v2849, %v2847
  %v2918 = vpack.c.b16 %v2850, %v2848
  %v2919 = vpack.c.b16 %v2853, %v2851
  %v2920 = vpack.c.b16 %v2854, %v2852
  %v2921 = vpack.c.b16 %v2857, %v2855
  %v2922 = vpack.c.b16 %v2858, %v2856
  %2987 = vmatprep.subr.bf16.mxu0 %v2860
  %2988 = vmatpush1.bf16.msra.mxu0 %v2859
  %2989 = vmatprep.subr.bf16.mxu0 %v2862
  %2990 = vmatpush1.bf16.msra.mxu0 %v2861
  %2991 = vmatprep.subr.bf16.mxu0 %v2864
  %2992 = vmatpush1.bf16.msra.mxu0 %v2863
  %2993 = vmatprep.subr.bf16.mxu0 %v2866
  %2994 = vmatpush1.bf16.msra.mxu0 %v2865
  %2995 = vmatprep.subr.bf16.mxu0 %v2868
  %2996 = vmatpush1.bf16.msra.mxu0 %v2867
  %2997 = vmatprep.subr.bf16.mxu0 %v2870
  %2998 = vmatpush1.bf16.msra.mxu0 %v2869
  %2999 = vmatprep.subr.bf16.mxu0 %v2872
  %3000 = vmatpush1.bf16.msra.mxu0 %v2871
  %3001 = vmatprep.subr.bf16.mxu0 %v2874
  %3002 = vmatpush1.bf16.msra.mxu0 %v2873
  %3003 = vmatprep.subr.bf16.mxu0 %v2876
  %3004 = vmatpush1.bf16.msra.mxu0 %v2875
  %3005 = vmatprep.subr.bf16.mxu0 %v2878
  %3006 = vmatpush1.bf16.msra.mxu0 %v2877
  %3007 = vmatprep.subr.bf16.mxu0 %v2880
  %3008 = vmatpush1.bf16.msra.mxu0 %v2879
  %3009 = vmatprep.subr.bf16.mxu0 %v2882
  %3010 = vmatpush1.bf16.msra.mxu0 %v2881
  %3011 = vmatprep.subr.bf16.mxu0 %v2884
  %3012 = vmatpush1.bf16.msra.mxu0 %v2883
  %3013 = vmatprep.subr.bf16.mxu0 %v2886
  %3014 = vmatpush1.bf16.msra.mxu0 %v2885
  %3015 = vmatprep.subr.bf16.mxu0 %v2888
  %3016 = vmatpush1.bf16.msra.mxu0 %v2887
  %3017 = vmatprep.subr.bf16.mxu0 %v2890
  %3018 = vmatpush1.bf16.msra.mxu0 %v2889
  %3019 = vmatprep.mubr.bf16.mxu0 %v2587
  %3020 = vmatmul.mubr.bf16.gmra.mrb[0].mxu0 %v2586
  %v3021 = vpop.f32.mrb[0].mxu0
  %v3022 = vadd.f32 %v2660, %v3021
  %v3023 = vpop.f32.mrb[0].mxu0
  %v3024 = vadd.f32 %v2664, %v3023
  %v3025 = vpop.f32.mrb[0].mxu0
  %v3026 = vadd.f32 %v2660, %v3025
  %v3027 = vpop.f32.mrb[0].mxu0
  %v3028 = vadd.f32 %v2664, %v3027
  %3029 = vdwg.mxu0
  %3030 = vmatprep.subr.bf16.mxu0 %v2892
  %3031 = vmatpush1.bf16.msra.mxu0 %v2891
  %3032 = vmatprep.subr.bf16.mxu0 %v2894
  %3033 = vmatpush1.bf16.msra.mxu0 %v2893
  %3034 = vmatprep.subr.bf16.mxu0 %v2896
  %3035 = vmatpush1.bf16.msra.mxu0 %v2895
  %3036 = vmatprep.subr.bf16.mxu0 %v2898
  %3037 = vmatpush1.bf16.msra.mxu0 %v2897
  %3038 = vmatprep.subr.bf16.mxu0 %v2900
  %3039 = vmatpush1.bf16.msra.mxu0 %v2899
  %3040 = vmatprep.subr.bf16.mxu0 %v2902
  %3041 = vmatpush1.bf16.msra.mxu0 %v2901
  %3042 = vmatprep.subr.bf16.mxu0 %v2904
  %3043 = vmatpush1.bf16.msra.mxu0 %v2903
  %3044 = vmatprep.subr.bf16.mxu0 %v2906
  %3045 = vmatpush1.bf16.msra.mxu0 %v2905
  %3046 = vmatprep.subr.bf16.mxu0 %v2908
  %3047 = vmatpush1.bf16.msra.mxu0 %v2907
  %3048 = vmatprep.subr.bf16.mxu0 %v2910
  %3049 = vmatpush1.bf16.msra.mxu0 %v2909
  %3050 = vmatprep.subr.bf16.mxu0 %v2912
  %3051 = vmatpush1.bf16.msra.mxu0 %v2911
  %3052 = vmatprep.subr.bf16.mxu0 %v2914
  %3053 = vmatpush1.bf16.msra.mxu0 %v2913
  %3054 = vmatprep.subr.bf16.mxu0 %v2916
  %3055 = vmatpush1.bf16.msra.mxu0 %v2915
  %3056 = vmatprep.subr.bf16.mxu0 %v2918
  %3057 = vmatpush1.bf16.msra.mxu0 %v2917
  %3058 = vmatprep.subr.bf16.mxu0 %v2920
  %3059 = vmatpush1.bf16.msra.mxu0 %v2919
  %3060 = vmatprep.subr.bf16.mxu0 %v2922
  %3061 = vmatpush1.bf16.msra.mxu0 %v2921
  %3062 = vmatprep.mubr.bf16.mxu0 %v2589
  %3063 = vmatmul.mubr.bf16.gmra.mrb[0].mxu0 %v2588
  %v3064 = vpop.f32.mrb[0].mxu0
  %v3065 = vadd.f32 %v3022, %v3064
  %v3066 = vpop.f32.mrb[0].mxu0
  %v3067 = vadd.f32 %v3024, %v3066
  %v3068 = vpop.f32.mrb[0].mxu0
  %v3069 = vadd.f32 %v3026, %v3068
  %v3070 = vpop.f32.mrb[0].mxu0
  %v3071 = vadd.f32 %v3028, %v3070
  %3072 = vdwg.mxu0
  %v3073 = vpack.c.bf16 %v3069, %v3065
  %v3074 = vpack.c.bf16 %v3071, %v3067
  %vm3075 = vcmp.gt.bf16.partialorder %v3073, 0
  %vm3076 = vcmp.gt.bf16.partialorder %v3074, 0
  %v3077 = vmul.bf16 %v3073, 1009007652
  %v3078 = vmul.bf16 %v3074, 1009007652
  %v3079 = vsel %vm3075, %v3073, %v3077
  %v3080 = vsel %vm3076, %v3074, %v3078
  %v3081 = vld [vmem:[%s4] sm:$0xf]
  %v3082 = vld [vmem:[%s4 + $0x4] sm:$0xf]
  %v3083 = vld [vmem:[%s4 + $0x8] sm:$0xf]
  %v3084 = vld [vmem:[%s4 + $0xc] sm:$0xf]
  %v3085 = vld [vmem:[%s4 + $0x10] sm:$0xf]
  %v3086 = vld [vmem:[%s4 + $0x14] sm:$0xf]
  %v3087 = vld [vmem:[%s4 + $0x18] sm:$0xf]
  %v3088 = vld [vmem:[%s4 + $0x1c] sm:$0xf]
  %v3089 = vld [vmem:[%s4 + $0x20] sm:$0xf]
  %v3090 = vld [vmem:[%s4 + $0x24] sm:$0xf]
  %v3091 = vld [vmem:[%s4 + $0x28] sm:$0xf]
  %v3092 = vld [vmem:[%s4 + $0x2c] sm:$0xf]
  %v3093 = vld [vmem:[%s4 + $0x30] sm:$0xf]
  %v3094 = vld [vmem:[%s4 + $0x34] sm:$0xf]
  %v3095 = vld [vmem:[%s4 + $0x38] sm:$0xf]
  %v3096 = vld [vmem:[%s4 + $0x3c] sm:$0xf]
  %v3097 = vld [vmem:[%s4 + $0x40] sm:$0xf]
  %v3098 = vld [vmem:[%s4 + $0x44] sm:$0xf]
  %v3099 = vld [vmem:[%s4 + $0x48] sm:$0xf]
  %v3100 = vld [vmem:[%s4 + $0x4c] sm:$0xf]
  %v3101 = vld [vmem:[%s4 + $0x50] sm:$0xf]
  %v3102 = vld [vmem:[%s4 + $0x54] sm:$0xf]
  %v3103 = vld [vmem:[%s4 + $0x58] sm:$0xf]
  %v3104 = vld [vmem:[%s4 + $0x5c] sm:$0xf]
  %v3105 = vld [vmem:[%s4 + $0x60] sm:$0xf]
  %v3106 = vld [vmem:[%s4 + $0x64] sm:$0xf]
  %v3107 = vld [vmem:[%s4 + $0x68] sm:$0xf]
  %v3108 = vld [vmem:[%s4 + $0x6c] sm:$0xf]
  %v3109 = vld [vmem:[%s4 + $0x70] sm:$0xf]
  %v3110 = vld [vmem:[%s4 + $0x74] sm:$0xf]
  %v3111 = vld [vmem:[%s4 + $0x78] sm:$0xf]
  %v3112 = vld [vmem:[%s4 + $0x7c] sm:$0xf]
  %v3113 = vld [vmem:[%s7 + $0x3] ss:$0 sm:$0xff]
  %v3146 = vunpack.c.l.b16 %v3081
  %v3147 = vunpack.c.l.b16 %v3082
  %v3148 = vunpack.c.l.b16 %v3083
  %v3149 = vunpack.c.l.b16 %v3084
  %v3150 = vunpack.c.l.b16 %v3085
  %v3151 = vunpack.c.l.b16 %v3086
  %v3152 = vunpack.c.l.b16 %v3087
  %v3153 = vunpack.c.l.b16 %v3088
  %v3154 = vunpack.c.l.b16 %v3089
  %v3155 = vunpack.c.l.b16 %v3090
  %v3156 = vunpack.c.l.b16 %v3091
  %v3157 = vunpack.c.l.b16 %v3092
  %v3158 = vunpack.c.l.b16 %v3093
  %v3159 = vunpack.c.l.b16 %v3094
  %v3160 = vunpack.c.l.b16 %v3095
  %v3161 = vunpack.c.l.b16 %v3096
  %v3162 = vunpack.c.l.b16 %v3097
  %v3163 = vunpack.c.l.b16 %v3098
  %v3164 = vunpack.c.l.b16 %v3099
  %v3165 = vunpack.c.l.b16 %v3100
  %v3166 = vunpack.c.l.b16 %v3101
  %v3167 = vunpack.c.l.b16 %v3102
  %v3168 = vunpack.c.l.b16 %v3103
  %v3169 = vunpack.c.l.b16 %v3104
  %v3170 = vunpack.c.l.b16 %v3105
  %v3171 = vunpack.c.l.b16 %v3106
  %v3172 = vunpack.c.l.b16 %v3107
  %v3173 = vunpack.c.l.b16 %v3108
  %v3174 = vunpack.c.l.b16 %v3109
  %v3175 = vunpack.c.l.b16 %v3110
  %v3176 = vunpack.c.l.b16 %v3111
  %v3177 = vunpack.c.l.b16 %v3112
  %v3178 = vpack.c.b16 %v3147, %v3146
  %v3179 = vpack.c.b16 %v3149, %v3148
  %v3180 = vpack.c.b16 %v3151, %v3150
  %v3181 = vpack.c.b16 %v3153, %v3152
  %v3182 = vpack.c.b16 %v3155, %v3154
  %v3183 = vpack.c.b16 %v3157, %v3156
  %v3184 = vpack.c.b16 %v3159, %v3158
  %v3185 = vpack.c.b16 %v3161, %v3160
  %v3186 = vpack.c.b16 %v3163, %v3162
  %v3187 = vpack.c.b16 %v3165, %v3164
  %v3188 = vpack.c.b16 %v3167, %v3166
  %v3189 = vpack.c.b16 %v3169, %v3168
  %v3190 = vpack.c.b16 %v3171, %v3170
  %v3191 = vpack.c.b16 %v3173, %v3172
  %v3192 = vpack.c.b16 %v3175, %v3174
  %v3193 = vpack.c.b16 %v3177, %v3176
  %3210 = vmatprep.subr.bf16.mxu0 0
  %3211 = vmatpush1.bf16.msra.mxu0 %v3178
  %3212 = vmatprep.subr.bf16.mxu0 0
  %3213 = vmatpush1.bf16.msra.mxu0 %v3179
  %3214 = vmatprep.subr.bf16.mxu0 0
  %3215 = vmatpush1.bf16.msra.mxu0 %v3180
  %3216 = vmatprep.subr.bf16.mxu0 0
  %3217 = vmatpush1.bf16.msra.mxu0 %v3181
  %3218 = vmatprep.subr.bf16.mxu0 0
  %3219 = vmatpush1.bf16.msra.mxu0 %v3182
  %3220 = vmatprep.subr.bf16.mxu0 0
  %3221 = vmatpush1.bf16.msra.mxu0 %v3183
  %3222 = vmatprep.subr.bf16.mxu0 0
  %3223 = vmatpush1.bf16.msra.mxu0 %v3184
  %3224 = vmatprep.subr.bf16.mxu0 0
  %3225 = vmatpush1.bf16.msra.mxu0 %v3185
  %3226 = vmatprep.subr.bf16.mxu0 0
  %3227 = vmatpush1.bf16.msra.mxu0 %v3186
  %3228 = vmatprep.subr.bf16.mxu0 0
  %3229 = vmatpush1.bf16.msra.mxu0 %v3187
  %3230 = vmatprep.subr.bf16.mxu0 0
  %3231 = vmatpush1.bf16.msra.mxu0 %v3188
  %3232 = vmatprep.subr.bf16.mxu0 0
  %3233 = vmatpush1.bf16.msra.mxu0 %v3189
  %3234 = vmatprep.subr.bf16.mxu0 0
  %3235 = vmatpush1.bf16.msra.mxu0 %v3190
  %3236 = vmatprep.subr.bf16.mxu0 0
  %3237 = vmatpush1.bf16.msra.mxu0 %v3191
  %3238 = vmatprep.subr.bf16.mxu0 0
  %3239 = vmatpush1.bf16.msra.mxu0 %v3192
  %3240 = vmatprep.subr.bf16.mxu0 0
  %3241 = vmatpush1.bf16.msra.mxu0 %v3193
  %3242 = vmatprep.mubr.bf16.mxu0 %v3080
  %3243 = vmatmul.mubr.bf16.gmra.mrb[0].mxu0 %v3079
  %v3244 = vpop.f32.mrb[0].mxu0
  %v3245 = vadd.f32 %v3113, %v3244
  %v3246 = vpop.f32.mrb[0].mxu0
  %v3247 = vpop.f32.mrb[0].mxu0
  %v3248 = vadd.f32 %v3113, %v3247
  %v3249 = vpop.f32.mrb[0].mxu0
  %3250 = vdwg.mxu0
  %v3251 = vpack.c.bf16 %v3248, %v3245
  %vm3252 = vcmp.gt.bf16.partialorder %v3251, 0
  %v3253 = vmul.bf16 %v3251, 1009007652
  %v3254 = vsel %vm3252, %v3251, %v3253
  %v3255 = vld [vmem:[%s5] sm:$0xf]
  %v3256 = vld [vmem:[%s5 + $0x4] sm:$0xf]
  %v3257 = vld [vmem:[%s5 + $0x8] sm:$0xf]
  %v3258 = vld [vmem:[%s5 + $0xc] sm:$0xf]
  %v3259 = vld [vmem:[%s5 + $0x10] sm:$0xf]
  %v3260 = vld [vmem:[%s5 + $0x14] sm:$0xf]
  %v3261 = vld [vmem:[%s5 + $0x18] sm:$0xf]
  %v3262 = vld [vmem:[%s5 + $0x1c] sm:$0xf]
  %v3263 = vld [vmem:[%s5 + $0x20] sm:$0xf]
  %v3264 = vld [vmem:[%s5 + $0x24] sm:$0xf]
  %v3265 = vld [vmem:[%s5 + $0x28] sm:$0xf]
  %v3266 = vld [vmem:[%s5 + $0x2c] sm:$0xf]
  %v3267 = vld [vmem:[%s5 + $0x30] sm:$0xf]
  %v3268 = vld [vmem:[%s5 + $0x34] sm:$0xf]
  %v3269 = vld [vmem:[%s5 + $0x38] sm:$0xf]
  %v3270 = vld [vmem:[%s5 + $0x3c] sm:$0xf]
  %v3271 = vld [vmem:[%s7 + $0x4] ss:$0 sm:$0xff]
  %v3288 = vunpack.c.l.b16 %v3255
  %v3289 = vunpack.c.l.b16 %v3256
  %v3290 = vunpack.c.l.b16 %v3257
  %v3291 = vunpack.c.l.b16 %v3258
  %v3292 = vunpack.c.l.b16 %v3259
  %v3293 = vunpack.c.l.b16 %v3260
  %v3294 = vunpack.c.l.b16 %v3261
  %v3295 = vunpack.c.l.b16 %v3262
  %v3296 = vunpack.c.l.b16 %v3263
  %v3297 = vunpack.c.l.b16 %v3264
  %v3298 = vunpack.c.l.b16 %v3265
  %v3299 = vunpack.c.l.b16 %v3266
  %v3300 = vunpack.c.l.b16 %v3267
  %v3301 = vunpack.c.l.b16 %v3268
  %v3302 = vunpack.c.l.b16 %v3269
  %v3303 = vunpack.c.l.b16 %v3270
  %v3304 = vpack.c.b16 %v3289, %v3288
  %v3305 = vpack.c.b16 %v3291, %v3290
  %v3306 = vpack.c.b16 %v3293, %v3292
  %v3307 = vpack.c.b16 %v3295, %v3294
  %v3308 = vpack.c.b16 %v3297, %v3296
  %v3309 = vpack.c.b16 %v3299, %v3298
  %v3310 = vpack.c.b16 %v3301, %v3300
  %v3311 = vpack.c.b16 %v3303, %v3302
  %3320 = vmatprep.subr.bf16.mxu0 0
  %3321 = vmatpush1.bf16.msra.mxu0 %v3304
  %3322 = vmatprep.subr.bf16.mxu0 0
  %3323 = vmatpush1.bf16.msra.mxu0 %v3305
  %3324 = vmatprep.subr.bf16.mxu0 0
  %3325 = vmatpush1.bf16.msra.mxu0 %v3306
  %3326 = vmatprep.subr.bf16.mxu0 0
  %3327 = vmatpush1.bf16.msra.mxu0 %v3307
  %3328 = vmatprep.subr.bf16.mxu0 0
  %3329 = vmatpush1.bf16.msra.mxu0 %v3308
  %3330 = vmatprep.subr.bf16.mxu0 0
  %3331 = vmatpush1.bf16.msra.mxu0 %v3309
  %3332 = vmatprep.subr.bf16.mxu0 0
  %3333 = vmatpush1.bf16.msra.mxu0 %v3310
  %3334 = vmatprep.subr.bf16.mxu0 0
  %3335 = vmatpush1.bf16.msra.mxu0 %v3311
  %3336 = vmatprep.subr.bf16.mxu0 0
  %3337 = vmatpush1.bf16.msra.mxu0 0
  %3338 = vmatprep.subr.bf16.mxu0 0
  %3339 = vmatpush1.bf16.msra.mxu0 0
  %3340 = vmatprep.subr.bf16.mxu0 0
  %3341 = vmatpush1.bf16.msra.mxu0 0
  %3342 = vmatprep.subr.bf16.mxu0 0
  %3343 = vmatpush1.bf16.msra.mxu0 0
  %3344 = vmatprep.subr.bf16.mxu0 0
  %3345 = vmatpush1.bf16.msra.mxu0 0
  %3346 = vmatprep.subr.bf16.mxu0 0
  %3347 = vmatpush1.bf16.msra.mxu0 0
  %3348 = vmatprep.subr.bf16.mxu0 0
  %3349 = vmatpush1.bf16.msra.mxu0 0
  %3350 = vmatprep.subr.bf16.mxu0 0
  %3351 = vmatpush1.bf16.msra.mxu0 0
  %3352 = vmatprep.mubr.bf16.mxu0 0
  %3353 = vmatmul.mubr.bf16.gmra.mrb[0].mxu0 %v3254
  %v3354 = vpop.f32.mrb[0].mxu0
  %v3355 = vadd.f32 %v3271, %v3354
  %v3356 = vpop.f32.mrb[0].mxu0
  %v3357 = vpop.f32.mrb[0].mxu0
  %v3358 = vadd.f32 %v3271, %v3357
  %v3359 = vpop.f32.mrb[0].mxu0
  %3360 = vdwg.mxu0
  %v3361 = vpack.c.bf16 %v3358, %v3355
  %vm3362 = vcmp.gt.bf16.partialorder %v3361, 0
  %v3363 = vmul.bf16 %v3361, 1009007652
  %v3364 = vsel %vm3362, %v3361, %v3363
  %v3365 = vld [vmem:[%s6] sm:$0xf]
  %v3366 = vld [vmem:[%s6 + $0x4] sm:$0xf]
  %v3367 = vld [vmem:[%s6 + $0x8] sm:$0xf]
  %v3368 = vld [vmem:[%s6 + $0xc] sm:$0xf]
  %v3369 = vld [vmem:[%s6 + $0x10] sm:$0xf]
  %v3370 = vld [vmem:[%s6 + $0x14] sm:$0xf]
  %v3371 = vld [vmem:[%s6 + $0x18] sm:$0xf]
  %v3372 = vld [vmem:[%s6 + $0x1c] sm:$0xf]
  %v3373 = vld [vmem:[%s6 + $0x20] sm:$0xf]
  %v3374 = vld [vmem:[%s6 + $0x24] sm:$0xf]
  %v3375 = vld [vmem:[%s6 + $0x28] sm:$0xf]
  %v3376 = vld [vmem:[%s6 + $0x2c] sm:$0xf]
  %v3377 = vld [vmem:[%s6 + $0x30] sm:$0xf]
  %v3378 = vld [vmem:[%s6 + $0x34] sm:$0xf]
  %v3379 = vld [vmem:[%s6 + $0x38] sm:$0xf]
  %v3380 = vld [vmem:[%s6 + $0x3c] sm:$0xf]
  %v3381 = vld [vmem:[%s7 + $0x5] ss:$0 sm:$0xff]
  %v3398 = vunpack.c.l.b16 %v3365
  %v3399 = vunpack.c.l.b16 %v3366
  %v3400 = vunpack.c.l.b16 %v3367
  %v3401 = vunpack.c.l.b16 %v3368
  %v3402 = vunpack.c.l.b16 %v3369
  %v3403 = vunpack.c.l.b16 %v3370
  %v3404 = vunpack.c.l.b16 %v3371
  %v3405 = vunpack.c.l.b16 %v3372
  %v3406 = vunpack.c.l.b16 %v3373
  %v3407 = vunpack.c.l.b16 %v3374
  %v3408 = vunpack.c.l.b16 %v3375
  %v3409 = vunpack.c.l.b16 %v3376
  %v3410 = vunpack.c.l.b16 %v3377
  %v3411 = vunpack.c.l.b16 %v3378
  %v3412 = vunpack.c.l.b16 %v3379
  %v3413 = vunpack.c.l.b16 %v3380
  %v3414 = vpack.c.b16 %v3399, %v3398
  %v3415 = vpack.c.b16 %v3401, %v3400
  %v3416 = vpack.c.b16 %v3403, %v3402
  %v3417 = vpack.c.b16 %v3405, %v3404
  %v3418 = vpack.c.b16 %v3407, %v3406
  %v3419 = vpack.c.b16 %v3409, %v3408
  %v3420 = vpack.c.b16 %v3411, %v3410
  %v3421 = vpack.c.b16 %v3413, %v3412
  %3430 = vmatprep.subr.bf16.mxu0 0
  %3431 = vmatpush1.bf16.msra.mxu0 %v3414
  %3432 = vmatprep.subr.bf16.mxu0 0
  %3433 = vmatpush1.bf16.msra.mxu0 %v3415
  %3434 = vmatprep.subr.bf16.mxu0 0
  %3435 = vmatpush1.bf16.msra.mxu0 %v3416
  %3436 = vmatprep.subr.bf16.mxu0 0
  %3437 = vmatpush1.bf16.msra.mxu0 %v3417
  %3438 = vmatprep.subr.bf16.mxu0 0
  %3439 = vmatpush1.bf16.msra.mxu0 %v3418
  %3440 = vmatprep.subr.bf16.mxu0 0
  %3441 = vmatpush1.bf16.msra.mxu0 %v3419
  %3442 = vmatprep.subr.bf16.mxu0 0
  %3443 = vmatpush1.bf16.msra.mxu0 %v3420
  %3444 = vmatprep.subr.bf16.mxu0 0
  %3445 = vmatpush1.bf16.msra.mxu0 %v3421
  %3446 = vmatprep.subr.bf16.mxu0 0
  %3447 = vmatpush1.bf16.msra.mxu0 0
  %3448 = vmatprep.subr.bf16.mxu0 0
  %3449 = vmatpush1.bf16.msra.mxu0 0
  %3450 = vmatprep.subr.bf16.mxu0 0
  %3451 = vmatpush1.bf16.msra.mxu0 0
  %3452 = vmatprep.subr.bf16.mxu0 0
  %3453 = vmatpush1.bf16.msra.mxu0 0
  %3454 = vmatprep.subr.bf16.mxu0 0
  %3455 = vmatpush1.bf16.msra.mxu0 0
  %3456 = vmatprep.subr.bf16.mxu0 0
  %3457 = vmatpush1.bf16.msra.mxu0 0
  %3458 = vmatprep.subr.bf16.mxu0 0
  %3459 = vmatpush1.bf16.msra.mxu0 0
  %3460 = vmatprep.subr.bf16.mxu0 0
  %3461 = vmatpush1.bf16.msra.mxu0 0
  %3462 = vmatprep.mubr.bf16.mxu0 0
  %3463 = vmatmul.mubr.bf16.gmra.mrb[0].mxu0 %v3364
  %v3464 = vpop.f32.mrb[0].mxu0
  %v3465 = vadd.f32 %v3381, %v3464
  %v3466 = vpop.f32.mrb[0].mxu0
  %v3467 = vpop.f32.mrb[0].mxu0
  %v3468 = vadd.f32 %v3381, %v3467
  %v3469 = vpop.f32.mrb[0].mxu0
  %3470 = vdwg.mxu0
  %v3471 = vpack.c.bf16 %v3468, %v3465
  %v3473 = vunpack.c.l.b16 %v3471
  %v3474 = vunpack.c.h.b16 %v3471
  %v3475 = vpack.c.b16 %v3473, %v3473
  %v3476 = vpack.c.b16 %v3474, %v3474
  %3479 = vst [vmem:[%s8] sm:$0xf] %v3475
  %3480 = vst [vmem:[%s8 + $0x4] sm:$0xf] %v3476
  // Predicated region
  $region34: #{_forward_impl.1} parent=0 // pred_check
    _
  $region35: #{_forward_impl.1} parent=0 // pred_check_branch
    %3482 = sbr.rel (0) target = $region37
  $region36: #{_forward_impl.1} parent=0 // pred_region
    _
  $region37: #{_forward_impl.1} parent=0 // pred_fallthru
    _
  // Predicated region
  $region38: #{_forward_impl.1} parent=0 // pred_check
    _
  $region39: #{_forward_impl.1} parent=0 // pred_check_branch
    %3484 = sbr.rel (0) target = $region41
  $region40: #{_forward_impl.1} parent=0 // pred_region
    _
  $region41: #{_forward_impl.1} parent=0 // pred_fallthru
    _

</llo_original>
